<compile_context>
chip_gen: v6e
topology: v6e:2x2x1
jax: 0.10.0
libtpu: 0.0.40
codegen_flags: <defaults>
</compile_context>

<pallas_src>
import functools

import jax
import jax.numpy as jnp
from jax.experimental import pallas as pl
from jax.experimental.pallas import tpu as pltpu


IN_CHANNELS_SURF = 25      # in_channels_surf
OUT_CHANNEL = 64           # out_channel (encoder output / top_net in_features)
HIDDEN = OUT_CHANNEL // 2  # 32
OUT_FEATURES = 1
LANE = 128


def _masif_site_kernel(surf_ref, wenc_ref, benc_ref,
                       w1_ref, b1_ref, w2_ref, b2_ref, out_ref):
    """Fused encoder-projection + top_net MLP for one tile of vertices (f32)."""
    x = surf_ref[...]                                            # (TILE_N, 25) f32

    # Encoder last linear + last_activation = relu  -> (TILE_N, 64)
    h = jnp.dot(x, wenc_ref[...], preferred_element_type=jnp.float32)
    h = jnp.maximum(h + benc_ref[...], 0.0)

    # top_net: Linear(64 -> 32) + ReLU
    t = jnp.dot(h, w1_ref[...], preferred_element_type=jnp.float32)
    t = jnp.maximum(t + b1_ref[...], 0.0)

    # Dropout(p=0.25): eval-mode identity.

    # top_net: Linear(32 -> 1), written as a (1,H) x (TILE_N,H)^T contraction so the
    # result is lane-dense (1, TILE_N) instead of a (TILE_N, 1) masked-store column.
    y = jax.lax.dot_general(
        w2_ref[...],                    # (1, HIDDEN)
        t,                              # (TILE_N, HIDDEN)
        dimension_numbers=(((1,), (1,)), ((), ())),
        preferred_element_type=jnp.float32,
    ) + b2_ref[...]                                              # (1, TILE_N)

    # Fully vreg-dense store: (1, TILE_N//128, 128) block, unmasked vst.
    out_ref[...] = y.reshape(out_ref.shape)


@functools.partial(jax.jit, static_argnums=(2,))
def _forward_flat(x, params, tile_n):
    """(padded_N, 25) f32 -> (padded_N,) f32 predictions, single pallas_call."""
    padded_n, c = x.shape
    assert c == IN_CHANNELS_SURF and padded_n % tile_n == 0 and tile_n % LANE == 0
    num_tiles = padded_n // tile_n
    rows = tile_n // LANE

    wenc, benc, w1, b1, w2, b2 = params
    benc2 = benc.reshape(1, OUT_CHANNEL)              # (1, 64)
    b12 = b1.reshape(1, HIDDEN)                       # (1, 32)
    w2_row = w2.reshape(1, HIDDEN)                    # (1, 32)  (= w2.T since out_features=1)
    b22 = b2.reshape(1, 1)                            # (1, 1)

    flops = 2 * padded_n * (IN_CHANNELS_SURF * OUT_CHANNEL
                            + OUT_CHANNEL * HIDDEN
                            + HIDDEN * OUT_FEATURES)
    param_bytes = 4 * (IN_CHANNELS_SURF * OUT_CHANNEL + OUT_CHANNEL
                       + OUT_CHANNEL * HIDDEN + HIDDEN + HIDDEN + 1)
    bytes_accessed = padded_n * (IN_CHANNELS_SURF + 1) * 4 + param_bytes

    out = pl.pallas_call(
        _masif_site_kernel,
        out_shape=jax.ShapeDtypeStruct((num_tiles, rows, LANE), jnp.float32),
        grid_spec=pltpu.PrefetchScalarGridSpec(
            num_scalar_prefetch=0,
            grid=(num_tiles,),
            in_specs=[
                pl.BlockSpec((tile_n, IN_CHANNELS_SURF), lambda i: (i, 0)),
                pl.BlockSpec((IN_CHANNELS_SURF, OUT_CHANNEL), lambda i: (0, 0)),
                pl.BlockSpec((1, OUT_CHANNEL), lambda i: (0, 0)),
                pl.BlockSpec((OUT_CHANNEL, HIDDEN), lambda i: (0, 0)),
                pl.BlockSpec((1, HIDDEN), lambda i: (0, 0)),
                pl.BlockSpec((1, HIDDEN), lambda i: (0, 0)),
                pl.BlockSpec((1, 1), lambda i: (0, 0)),
            ],
            out_specs=pl.BlockSpec((1, rows, LANE), lambda i: (i, 0, 0)),
        ),
        compiler_params=pltpu.CompilerParams(
            dimension_semantics=("parallel",)),
        cost_estimate=pl.CostEstimate(
            flops=flops, transcendentals=0, bytes_accessed=bytes_accessed),
    )(x, wenc, benc2, w1, b12, w2_row, b22)

    return out.reshape(-1)   # (padded_n,) in vertex order


def _choose_tile_n(n):
    """Megacore-aware tile size: biggest tile that still leaves >= 4 grid steps
    (>= 2 per TensorCore on v7x); grows to 2048 for large inputs on v5e/v6e."""
    for t in (2048, 1024, 512, 256):
        if n >= 4 * t:
            return t
    return 256


def _bucket_num_tiles(t):
    """Round the grid length up to 2 significant bits (<= 25% pad) so distinct
    batch sizes hit a small set of compiled shapes instead of recompiling."""
    if t <= 2:
        return t
    step = max(1, pl.next_power_of_2(t) // 4)
    return ((t + step - 1) // step) * step


def masif_site_forward(surfaces, params):
    """Mirror MasifSiteNet.forward: list-in, list-out.

    The MLP is purely per-vertex, so all surfaces are concatenated along the
    vertex dim and processed in one kernel launch; the zero padding needed for
    tiling/bucketing is folded into that same concat (no extra pad/cast pass).
    """
    lens = [int(s.shape[0]) for s in surfaces]
    n = sum(lens)
    tile_n = _choose_tile_n(n)
    num_tiles = _bucket_num_tiles(pl.cdiv(n, tile_n))
    padded_n = num_tiles * tile_n

    pieces = [s.astype(jnp.float32) for s in surfaces]
    if padded_n > n:
        pieces.append(jnp.zeros((padded_n - n, IN_CHANNELS_SURF), jnp.float32))
    x_all = jnp.concatenate(pieces, axis=0)          # (padded_n, 25) f32

    flat = _forward_flat(x_all, params, tile_n)      # (padded_n,)

    outs, off = [], 0
    for ln in lens:
        outs.append(flat[off:off + ln].reshape(ln, OUT_FEATURES))
        off += ln
    return outs


def init_params(key):
    """Deterministic synthetic parameters with the module's shapes."""
    ks = jax.random.split(key, 6)
    wenc = jax.random.normal(ks[0], (IN_CHANNELS_SURF, OUT_CHANNEL), jnp.float32) * 0.1
    benc = jax.random.normal(ks[1], (OUT_CHANNEL,), jnp.float32) * 0.01
    w1 = jax.random.normal(ks[2], (OUT_CHANNEL, HIDDEN), jnp.float32) * 0.1
    b1 = jax.random.normal(ks[3], (HIDDEN,), jnp.float32) * 0.01
    w2 = jax.random.normal(ks[4], (HIDDEN, OUT_FEATURES), jnp.float32) * 0.1
    b2 = jax.random.normal(ks[5], (OUT_FEATURES,), jnp.float32) * 0.01
    return (wenc, benc, w1, b1, w2, b2)


def _reference_f32(surf_x, params):
    """Full-f32 reference (matches the original module's math)."""
    wenc, benc, w1, b1, w2, b2 = params
    h = jnp.maximum(surf_x @ wenc + benc, 0.0)
    t = jnp.maximum(h @ w1 + b1, 0.0)
    return t @ w2 + b2


if __name__ == "__main__":
    key = jax.random.PRNGKey(0)
    pkey, d0, d1 = jax.random.split(key, 3)
    params = init_params(pkey)

    # A "batch" of two protein surfaces (one entry per protein in the processed
    # list), with 1500 and 2000 surface vertices and 25 surface input features.
    surf_a = jax.random.normal(d0, (1500, IN_CHANNELS_SURF), jnp.float32)
    surf_b = jax.random.normal(d1, (2000, IN_CHANNELS_SURF), jnp.float32)

    outs = masif_site_forward([surf_a, surf_b], params)
    outs = [jax.block_until_ready(o) for o in outs]

    for s, o in zip([surf_a, surf_b], outs):
        assert o.shape == (s.shape[0], OUT_FEATURES)
        ref = _reference_f32(s, params)
        err = float(jnp.max(jnp.abs(o - ref)))
        assert err < 2e-2, err

    print("KERNEL_OK")
</pallas_src>

<mosaic_0001>
module attributes {stable_mosaic.version = 11 : i64} {
  func.func @_masif_site_kernel(%arg0: i32, %arg1: memref<512x25xf32, #tpu.memory_space<vmem>>, %arg2: memref<25x64xf32, #tpu.memory_space<vmem>>, %arg3: memref<1x64xf32, #tpu.memory_space<vmem>>, %arg4: memref<64x32xf32, #tpu.memory_space<vmem>>, %arg5: memref<1x32xf32, #tpu.memory_space<vmem>>, %arg6: memref<1x32xf32, #tpu.memory_space<vmem>>, %arg7: memref<1x1xf32, #tpu.memory_space<vmem>>, %arg8: memref<1x4x128xf32, #tpu.memory_space<vmem>>) attributes {dimension_semantics = [#tpu.dimension_semantics<parallel>], iteration_bounds = array<i64: 8>, scalar_prefetch = 0 : i64, scratch_operands = 0 : i64, tpu.core_type = #tpu.core_type<tc>, window_params = [{transform_indices = @transform_0, window_bounds = array<i64: 512, 25>}, {pipeline_mode = #tpu.pipeline_mode<synchronous>, transform_indices = @transform_1, window_bounds = array<i64: 25, 64>}, {pipeline_mode = #tpu.pipeline_mode<synchronous>, transform_indices = @transform_2, window_bounds = array<i64: 1, 64>}, {pipeline_mode = #tpu.pipeline_mode<synchronous>, transform_indices = @transform_3, window_bounds = array<i64: 64, 32>}, {pipeline_mode = #tpu.pipeline_mode<synchronous>, transform_indices = @transform_4, window_bounds = array<i64: 1, 32>}, {pipeline_mode = #tpu.pipeline_mode<synchronous>, transform_indices = @transform_5, window_bounds = array<i64: 1, 32>}, {pipeline_mode = #tpu.pipeline_mode<synchronous>, transform_indices = @transform_6, window_bounds = array<i64: 1, 1>}, {transform_indices = @transform_7, window_bounds = array<i64: 1, 4, 128>}]} {
    %c0 = arith.constant 0 : index
    %c0_0 = arith.constant 0 : index
    %0 = vector.load %arg1[%c0, %c0_0] : memref<512x25xf32, #tpu.memory_space<vmem>>, vector<512x25xf32>
    %c0_1 = arith.constant 0 : index
    %c0_2 = arith.constant 0 : index
    %1 = vector.load %arg2[%c0_1, %c0_2] : memref<25x64xf32, #tpu.memory_space<vmem>>, vector<25x64xf32>
    %cst = arith.constant dense<0.000000e+00> : vector<512x64xf32>
    %2 = tpu.matmul %0, %1, %cst {dimension_numbers = #tpu.dot_dimension_numbers<[1], [0], [0], [1], [0, 0, 1, 1], [], []>} : vector<512x25xf32>, vector<25x64xf32>, vector<512x64xf32> -> vector<512x64xf32>
    %c0_3 = arith.constant 0 : index
    %c0_4 = arith.constant 0 : index
    %3 = vector.load %arg3[%c0_3, %c0_4] : memref<1x64xf32, #tpu.memory_space<vmem>>, vector<1x64xf32>
    %4 = vector.broadcast %3 : vector<1x64xf32> to vector<512x64xf32>
    %5 = arith.addf %2, %4 : vector<512x64xf32>
    %cst_5 = arith.constant 0.000000e+00 : f32
    %6 = vector.broadcast %cst_5 : f32 to vector<512x64xf32>
    %7 = arith.maximumf %5, %6 : vector<512x64xf32>
    %c0_6 = arith.constant 0 : index
    %c0_7 = arith.constant 0 : index
    %8 = vector.load %arg4[%c0_6, %c0_7] : memref<64x32xf32, #tpu.memory_space<vmem>>, vector<64x32xf32>
    %cst_8 = arith.constant dense<0.000000e+00> : vector<512x32xf32>
    %9 = tpu.matmul %7, %8, %cst_8 {dimension_numbers = #tpu.dot_dimension_numbers<[1], [0], [0], [1], [0, 0, 1, 1], [], []>} : vector<512x64xf32>, vector<64x32xf32>, vector<512x32xf32> -> vector<512x32xf32>
    %c0_9 = arith.constant 0 : index
    %c0_10 = arith.constant 0 : index
    %10 = vector.load %arg5[%c0_9, %c0_10] : memref<1x32xf32, #tpu.memory_space<vmem>>, vector<1x32xf32>
    %11 = vector.broadcast %10 : vector<1x32xf32> to vector<512x32xf32>
    %12 = arith.addf %9, %11 : vector<512x32xf32>
    %cst_11 = arith.constant 0.000000e+00 : f32
    %13 = vector.broadcast %cst_11 : f32 to vector<512x32xf32>
    %14 = arith.maximumf %12, %13 : vector<512x32xf32>
    %c0_12 = arith.constant 0 : index
    %c0_13 = arith.constant 0 : index
    %15 = vector.load %arg6[%c0_12, %c0_13] : memref<1x32xf32, #tpu.memory_space<vmem>>, vector<1x32xf32>
    %cst_14 = arith.constant dense<0.000000e+00> : vector<1x512xf32>
    %16 = tpu.matmul %15, %14, %cst_14 {dimension_numbers = #tpu.dot_dimension_numbers<[1], [1], [0], [0], [0, 0, 1, 0], [], []>} : vector<1x32xf32>, vector<512x32xf32>, vector<1x512xf32> -> vector<1x512xf32>
    %c0_15 = arith.constant 0 : index
    %c0_16 = arith.constant 0 : index
    %17 = vector.load %arg7[%c0_15, %c0_16] : memref<1x1xf32, #tpu.memory_space<vmem>>, vector<1x1xf32>
    %18 = vector.broadcast %17 : vector<1x1xf32> to vector<1x512xf32>
    %19 = arith.addf %16, %18 : vector<1x512xf32>
    %20 = vector.shape_cast %19 : vector<1x512xf32> to vector<1x4x128xf32>
    %c0_17 = arith.constant 0 : index
    %c0_18 = arith.constant 0 : index
    %c0_19 = arith.constant 0 : index
    %21 = vector.load %arg8[%c0_17, %c0_18, %c0_19] : memref<1x4x128xf32, #tpu.memory_space<vmem>>, vector<1x4x128xf32>
    tpu.vector_store %arg8[%c0_17, %c0_18, %c0_19], %20 {strides = array<i32>} : memref<1x4x128xf32, #tpu.memory_space<vmem>>, vector<1x4x128xf32>,
    return
  }
  func.func @transform_0(%arg0: i32) -> (i32, i32) {
    %c0_i32 = arith.constant 0 : i32
    %c0_i32_0 = arith.constant 0 : i32
    return %arg0, %c0_i32 : i32, i32
  }
  func.func @transform_1(%arg0: i32) -> (i32, i32) {
    %c0_i32 = arith.constant 0 : i32
    %c0_i32_0 = arith.constant 0 : i32
    %c0_i32_1 = arith.constant 0 : i32
    return %c0_i32, %c0_i32_0 : i32, i32
  }
  func.func @transform_2(%arg0: i32) -> (i32, i32) {
    %c0_i32 = arith.constant 0 : i32
    %c0_i32_0 = arith.constant 0 : i32
    %c0_i32_1 = arith.constant 0 : i32
    return %c0_i32, %c0_i32_0 : i32, i32
  }
  func.func @transform_3(%arg0: i32) -> (i32, i32) {
    %c0_i32 = arith.constant 0 : i32
    %c0_i32_0 = arith.constant 0 : i32
    %c0_i32_1 = arith.constant 0 : i32
    return %c0_i32, %c0_i32_0 : i32, i32
  }
  func.func @transform_4(%arg0: i32) -> (i32, i32) {
    %c0_i32 = arith.constant 0 : i32
    %c0_i32_0 = arith.constant 0 : i32
    %c0_i32_1 = arith.constant 0 : i32
    return %c0_i32, %c0_i32_0 : i32, i32
  }
  func.func @transform_5(%arg0: i32) -> (i32, i32) {
    %c0_i32 = arith.constant 0 : i32
    %c0_i32_0 = arith.constant 0 : i32
    %c0_i32_1 = arith.constant 0 : i32
    return %c0_i32, %c0_i32_0 : i32, i32
  }
  func.func @transform_6(%arg0: i32) -> (i32, i32) {
    %c0_i32 = arith.constant 0 : i32
    %c0_i32_0 = arith.constant 0 : i32
    %c0_i32_1 = arith.constant 0 : i32
    return %c0_i32, %c0_i32_0 : i32, i32
  }
  func.func @transform_7(%arg0: i32) -> (i32, i32, i32) {
    %c0_i32 = arith.constant 0 : i32
    %c0_i32_0 = arith.constant 0 : i32
    %c0_i32_1 = arith.constant 0 : i32
    return %arg0, %c0_i32, %c0_i32_0 : i32, i32, i32
  }
}

</mosaic_0001>

<llo_original>
// kernel: _forward_flat.1
$region0: #{_forward_flat.1}
  #allocation0 [shape = 'u32[]', space=smem, size = 0x4, offset = 0x4, fixed_abs, tag = 'smem constant byte address 0x4 - core index']
  #allocation1 [shape = 'u32[144,128]{1,0:T(1,128)}', space=vmem, size = 0x12000, scoped, tag = 'internal scratch']
  #allocation2 [shape = 'f32[1,1]{1,0:T(1,128)S(1)}', space=vmem, size = 0x200, scoped, tag = 'scoped memory for _forward_flat.1']
  %s0 = inlined_call_operand.vmem [shape: f32[4096,25], index: 0, kind: input, shape index: {}]
  %s1 = inlined_call_operand.vmem [shape: f32[25,64], index: 1, kind: input, shape index: {}]
  %s2 = inlined_call_operand.vmem [shape: f32[1,64], index: 2, kind: input, shape index: {}]
  %s3 = inlined_call_operand.vmem [shape: f32[64,32], index: 3, kind: input, shape index: {}]
  %s4 = inlined_call_operand.vmem [shape: f32[1,32], index: 4, kind: input, shape index: {}]
  %s5 = inlined_call_operand.vmem [shape: f32[1,32], index: 5, kind: input, shape index: {}]
  %s6 = inlined_call_operand.<no memory space> [shape: f32[1,1], index: 6, kind: input, shape index: {}]
  %s7 = inlined_call_operand.hbm [shape: f32[8,4,128], index: 7, kind: output, shape index: {}]
  %s8 = sld [smem:[#allocation0]]
  $region61: #{_forward_flat.1} parent=0
    _
  %s10 = ssub.s32 1, %s8
  %s11 = scalar_select 0, %s10, %s8
  %v12 = vstv %s6
  %13 = vst [vmem:[#allocation2] sm:$0x1] %v12
  $region1: #{_forward_flat.1} parent=0
    #allocation3 [shape = 'u8[4096]{0}', space=vmem, size = 0x1000, scoped, tag = 'output window, operand 0']
    #allocation4 [shape = 's32[2]{0}', space=sflag, size = 0x8, scoped, tag = 'scoped memory for _forward_flat.1']
    %14 = vsyncpa [#allocation4], 0
    %s15 = scalar_lea.sflag [#allocation4], 1
    %16 = vsyncpa %s15, 0
    loop: start=0, step=1, limit=10
    $region2: #{_forward_flat.1} parent=1 // loop_pre_header
      _
    $region3: #{_forward_flat.1} parent=1 // loop_header
      %s18 = sphi 0, %s22
      %p19 = scmp.ge.s32.totalorder %s18, 10
      %s28 = sphi 0, %s30
      %s31 = sphi 0, %s28
      %s32 = sphi 0, %s31
      %s48 = sphi 0, %s32
      %s52 = sphi 0, %s52
      %s54 = sphi 0, %s52
      %s55 = sphi 0, %s54
      %s69 = sphi 0, %s55
      %s73 = sphi 0, %s73
      %s75 = sphi 0, %s73
      %s76 = sphi 0, %s75
      %s90 = sphi 0, %s76
      %s94 = sphi 0, %s94
      %s96 = sphi 0, %s94
      %s97 = sphi 0, %s96
      %s111 = sphi 0, %s97
      %s115 = sphi 0, %s115
      %s117 = sphi 0, %s115
      %s118 = sphi 0, %s117
      %s132 = sphi 0, %s118
      %s136 = sphi 0, %s136
      %s138 = sphi 0, %s136
      %s139 = sphi 0, %s138
      %s153 = sphi 0, %s139
      %s157 = sphi 0, %s157
      %s159 = sphi 0, %s157
      %s160 = sphi 0, %s159
      %s174 = sphi 0, %s160
      %s180 = sphi 0, %s182
      %s183 = sphi 0, %s180
      %s184 = sphi 0, %s183
      %s200 = sphi 0, %s184
    $region4: #{_forward_flat.1} parent=1 // loop_header_branch
      %21 = sbr.rel (%p19) target = $region8
    $region5: #{_forward_flat.1} parent=1 // loop_body
      %s23 = ssub.s32 %s18, 1
      %s24 = ssub.s32 %s18, 2
      %s25 = sadd.s32 %s18, 1
      %s26 = ssub.s32 %s18, %s25
      %p27 = scmp.eq.s32.totalorder %s26, 0
      %s29 = sadd.s32 %s28, 1
      %s30 = scalar_select %p27, %s28, %s29
      %p33 = pneg %p27
      %p34 = scmp.eq.s32.totalorder %s18, 7
      %p35 = por %p33, %p34
      %p36 = scmp.ne.s32.totalorder %s28, %s31
      %p37 = scmp.eq.s32.totalorder %s18, 0
      %p38 = por %p36, %p37
      %p39 = scmp.ne.s32.totalorder %s28, %s31
      %p40 = scmp.eq.s32.totalorder %s23, 7
      %p41 = por %p39, %p40
      %p42 = scmp.ne.s32.totalorder %s31, %s32
      %p43 = scmp.eq.s32.totalorder %s23, 0
      %p44 = por %p42, %p43
      %p45 = scmp.ne.s32.totalorder %s31, %s32
      %p46 = scmp.eq.s32.totalorder %s24, 7
      %p47 = por %p45, %p46
      %p49 = scmp.ne.s32.totalorder %s32, %s48
      %p50 = scmp.eq.s32.totalorder %s24, 0
      %p51 = por %p49, %p50
      %s53 = sadd.s32 %s52, 1
      %p56 = scmp.eq.s32.totalorder %s18, 7
      %p57 = scmp.ne.s32.totalorder %s52, %s54
      %p58 = scmp.eq.s32.totalorder %s18, 0
      %p59 = por %p57, %p58
      %p60 = scmp.ne.s32.totalorder %s52, %s54
      %p61 = scmp.eq.s32.totalorder %s23, 7
      %p62 = por %p60, %p61
      %p63 = scmp.ne.s32.totalorder %s54, %s55
      %p64 = scmp.eq.s32.totalorder %s23, 0
      %p65 = por %p63, %p64
      %p66 = scmp.ne.s32.totalorder %s54, %s55
      %p67 = scmp.eq.s32.totalorder %s24, 7
      %p68 = por %p66, %p67
      %p70 = scmp.ne.s32.totalorder %s55, %s69
      %p71 = scmp.eq.s32.totalorder %s24, 0
      %p72 = por %p70, %p71
      %s74 = sadd.s32 %s73, 1
      %p77 = scmp.eq.s32.totalorder %s18, 7
      %p78 = scmp.ne.s32.totalorder %s73, %s75
      %p79 = scmp.eq.s32.totalorder %s18, 0
      %p80 = por %p78, %p79
      %p81 = scmp.ne.s32.totalorder %s73, %s75
      %p82 = scmp.eq.s32.totalorder %s23, 7
      %p83 = por %p81, %p82
      %p84 = scmp.ne.s32.totalorder %s75, %s76
      %p85 = scmp.eq.s32.totalorder %s23, 0
      %p86 = por %p84, %p85
      %p87 = scmp.ne.s32.totalorder %s75, %s76
      %p88 = scmp.eq.s32.totalorder %s24, 7
      %p89 = por %p87, %p88
      %p91 = scmp.ne.s32.totalorder %s76, %s90
      %p92 = scmp.eq.s32.totalorder %s24, 0
      %p93 = por %p91, %p92
      %s95 = sadd.s32 %s94, 1
      %p98 = scmp.eq.s32.totalorder %s18, 7
      %p99 = scmp.ne.s32.totalorder %s94, %s96
      %p100 = scmp.eq.s32.totalorder %s18, 0
      %p101 = por %p99, %p100
      %p102 = scmp.ne.s32.totalorder %s94, %s96
      %p103 = scmp.eq.s32.totalorder %s23, 7
      %p104 = por %p102, %p103
      %p105 = scmp.ne.s32.totalorder %s96, %s97
      %p106 = scmp.eq.s32.totalorder %s23, 0
      %p107 = por %p105, %p106
      %p108 = scmp.ne.s32.totalorder %s96, %s97
      %p109 = scmp.eq.s32.totalorder %s24, 7
      %p110 = por %p108, %p109
      %p112 = scmp.ne.s32.totalorder %s97, %s111
      %p113 = scmp.eq.s32.totalorder %s24, 0
      %p114 = por %p112, %p113
      %s116 = sadd.s32 %s115, 1
      %p119 = scmp.eq.s32.totalorder %s18, 7
      %p120 = scmp.ne.s32.totalorder %s115, %s117
      %p121 = scmp.eq.s32.totalorder %s18, 0
      %p122 = por %p120, %p121
      %p123 = scmp.ne.s32.totalorder %s115, %s117
      %p124 = scmp.eq.s32.totalorder %s23, 7
      %p125 = por %p123, %p124
      %p126 = scmp.ne.s32.totalorder %s117, %s118
      %p127 = scmp.eq.s32.totalorder %s23, 0
      %p128 = por %p126, %p127
      %p129 = scmp.ne.s32.totalorder %s117, %s118
      %p130 = scmp.eq.s32.totalorder %s24, 7
      %p131 = por %p129, %p130
      %p133 = scmp.ne.s32.totalorder %s118, %s132
      %p134 = scmp.eq.s32.totalorder %s24, 0
      %p135 = por %p133, %p134
      %s137 = sadd.s32 %s136, 1
      %p140 = scmp.eq.s32.totalorder %s18, 7
      %p141 = scmp.ne.s32.totalorder %s136, %s138
      %p142 = scmp.eq.s32.totalorder %s18, 0
      %p143 = por %p141, %p142
      %p144 = scmp.ne.s32.totalorder %s136, %s138
      %p145 = scmp.eq.s32.totalorder %s23, 7
      %p146 = por %p144, %p145
      %p147 = scmp.ne.s32.totalorder %s138, %s139
      %p148 = scmp.eq.s32.totalorder %s23, 0
      %p149 = por %p147, %p148
      %p150 = scmp.ne.s32.totalorder %s138, %s139
      %p151 = scmp.eq.s32.totalorder %s24, 7
      %p152 = por %p150, %p151
      %p154 = scmp.ne.s32.totalorder %s139, %s153
      %p155 = scmp.eq.s32.totalorder %s24, 0
      %p156 = por %p154, %p155
      %s158 = sadd.s32 %s157, 1
      %p161 = scmp.eq.s32.totalorder %s18, 7
      %p162 = scmp.ne.s32.totalorder %s157, %s159
      %p163 = scmp.eq.s32.totalorder %s18, 0
      %p164 = por %p162, %p163
      %p165 = scmp.ne.s32.totalorder %s157, %s159
      %p166 = scmp.eq.s32.totalorder %s23, 7
      %p167 = por %p165, %p166
      %p168 = scmp.ne.s32.totalorder %s159, %s160
      %p169 = scmp.eq.s32.totalorder %s23, 0
      %p170 = por %p168, %p169
      %p171 = scmp.ne.s32.totalorder %s159, %s160
      %p172 = scmp.eq.s32.totalorder %s24, 7
      %p173 = por %p171, %p172
      %p175 = scmp.ne.s32.totalorder %s160, %s174
      %p176 = scmp.eq.s32.totalorder %s24, 0
      %p177 = por %p175, %p176
      %s178 = ssub.s32 %s18, %s25
      %p179 = scmp.eq.s32.totalorder %s178, 0
      %s181 = sadd.s32 %s180, 1
      %s182 = scalar_select %p179, %s180, %s181
      %p185 = pneg %p179
      %p186 = scmp.eq.s32.totalorder %s18, 7
      %p187 = por %p185, %p186
      %p188 = scmp.ne.s32.totalorder %s180, %s183
      %p189 = scmp.eq.s32.totalorder %s18, 0
      %p190 = por %p188, %p189
      %p191 = scmp.ne.s32.totalorder %s180, %s183
      %p192 = scmp.eq.s32.totalorder %s23, 7
      %p193 = por %p191, %p192
      %p194 = scmp.ne.s32.totalorder %s183, %s184
      %p195 = scmp.eq.s32.totalorder %s23, 0
      %p196 = por %p194, %p195
      %p197 = scmp.ne.s32.totalorder %s183, %s184
      %p198 = scmp.eq.s32.totalorder %s24, 7
      %p199 = por %p197, %p198
      %p201 = scmp.ne.s32.totalorder %s184, %s200
      %p202 = scmp.eq.s32.totalorder %s24, 0
      %p203 = por %p201, %p202
      %p204 = scmp.le.s32.totalorder 1, %s18
      %p205 = scmp.lt.s32.totalorder %s18, 9
      %p206 = pnand %p204, %p205
      %p207 = pneg %p206
      // Predicated region
      $region9: #{_forward_flat.1} parent=5 // pred_check
        _
      $region10: #{_forward_flat.1} parent=5 // pred_check_branch
        %209 = sbr.rel (%p206) target = $region12
      $region11: #{_forward_flat.1} parent=5 // pred_region
        %s210 = ssub.s32 %s18, 1
        // Predicated region
        $region13: #{_forward_flat.1} parent=11 // pred_check
          %p211 = pneg %p65
        $region14: #{_forward_flat.1} parent=11 // pred_check_branch
          %213 = sbr.rel (%p211) target = $region16
        $region15: #{_forward_flat.1} parent=11 // pred_region
          _
        $region16: #{_forward_flat.1} parent=11 // pred_fallthru
          _
        // Predicated region
        $region17: #{_forward_flat.1} parent=11 // pred_check
          %p214 = pneg %p86
        $region18: #{_forward_flat.1} parent=11 // pred_check_branch
          %216 = sbr.rel (%p214) target = $region20
        $region19: #{_forward_flat.1} parent=11 // pred_region
          _
        $region20: #{_forward_flat.1} parent=11 // pred_fallthru
          _
        // Predicated region
        $region21: #{_forward_flat.1} parent=11 // pred_check
          %p217 = pneg %p107
        $region22: #{_forward_flat.1} parent=11 // pred_check_branch
          %219 = sbr.rel (%p217) target = $region24
        $region23: #{_forward_flat.1} parent=11 // pred_region
          _
        $region24: #{_forward_flat.1} parent=11 // pred_fallthru
          _
        // Predicated region
        $region25: #{_forward_flat.1} parent=11 // pred_check
          %p220 = pneg %p128
        $region26: #{_forward_flat.1} parent=11 // pred_check_branch
          %222 = sbr.rel (%p220) target = $region28
        $region27: #{_forward_flat.1} parent=11 // pred_region
          _
        $region28: #{_forward_flat.1} parent=11 // pred_fallthru
          _
        // Predicated region
        $region29: #{_forward_flat.1} parent=11 // pred_check
          %p223 = pneg %p149
        $region30: #{_forward_flat.1} parent=11 // pred_check_branch
          %225 = sbr.rel (%p223) target = $region32
        $region31: #{_forward_flat.1} parent=11 // pred_region
          _
        $region32: #{_forward_flat.1} parent=11 // pred_fallthru
          _
        // Predicated region
        $region33: #{_forward_flat.1} parent=11 // pred_check
          %p226 = pneg %p170
        $region34: #{_forward_flat.1} parent=11 // pred_check_branch
          %228 = sbr.rel (%p226) target = $region36
        $region35: #{_forward_flat.1} parent=11 // pred_region
          _
        $region36: #{_forward_flat.1} parent=11 // pred_fallthru
          _
      $region12: #{_forward_flat.1} parent=5 // pred_fallthru
        _
      %p229 = scmp.lt.s32.totalorder %s18, 8
      // Predicated region
      $region37: #{_forward_flat.1} parent=5 // pred_check
        %p230 = pneg %p229
      $region38: #{_forward_flat.1} parent=5 // pred_check_branch
        %232 = sbr.rel (%p230) target = $region40
      $region39: #{_forward_flat.1} parent=5 // pred_region
        // Predicated region
        $region41: #{_forward_flat.1} parent=39 // pred_check
          %p233 = pneg %p38
        $region42: #{_forward_flat.1} parent=39 // pred_check_branch
          %235 = sbr.rel (%p233) target = $region44
        $region43: #{_forward_flat.1} parent=39 // pred_region
          %s236 = smul.u32 64, %s18
          %p237 = scmp.lt.s32.totalorder %s236, 511
          %s238 = scalar_select %p237, %s236, 511
          %s239 = smul.addr %s238, 8
          %s240 = scalar_lea.vmem %s0, %s239
          %s241 = smul.u32 64, %s18
        $region44: #{_forward_flat.1} parent=39 // pred_fallthru
          _
      $region40: #{_forward_flat.1} parent=5 // pred_fallthru
        _
      %p242 = scmp.le.s32.totalorder 1, %s18
      %p243 = scmp.lt.s32.totalorder %s18, 9
      %p244 = pnand %p242, %p243
      %p245 = pneg %p244
      // Predicated region
      $region45: #{_forward_flat.1} parent=5 // pred_check
        _
      $region46: #{_forward_flat.1} parent=5 // pred_check_branch
        %247 = sbr.rel (%p244) target = $region48
      $region47: #{_forward_flat.1} parent=5 // pred_region
        %s248 = ssub.s32 %s18, 1
        %s249 = smul.u32 64, %s23
        %p250 = scmp.lt.s32.totalorder %s249, 511
        %s251 = scalar_select %p250, %s249, 511
        %s252 = smul.addr %s251, 8
        %s253 = scalar_lea.vmem %s0, %s252
        %p254 = pneg %p44
        %p255 = pneg %p41
        %p256 = pneg %p65
        %p257 = pneg %p62
        %p258 = pneg %p86
        %p259 = pneg %p83
        %p260 = pneg %p107
        %p261 = pneg %p104
        %p262 = pneg %p128
        %p263 = pneg %p125
        %p264 = pneg %p149
        %p265 = pneg %p146
        %p266 = pneg %p170
        %p267 = pneg %p167
        %p268 = pneg %p196
        %p269 = pneg %p193
        %s270 = sand.u32 %s183, 1
        %s271 = scalar_lea.sflag [#allocation4], %s270
        %s272 = sand.u32 %s183, 1
        %s273 = smul.addr %s272, 4
        %s274 = scalar_lea.vmem [#allocation3], %s273
        %s275 = smul.u32 64, %s23
        %p276 = scmp.lt.s32.totalorder %s275, 511
        %s277 = scalar_select %p276, %s275, 511
        %s278 = smul.addr %s277, 8
        %s279 = scalar_lea.vmem %s0, %s278
        %s280 = smul.u32 64, %s23
        %v281 = vld [vmem:[%s279] sm:$0xff]
        %v282 = vld [vmem:[%s279 + $0x8] sm:$0xff]
        %v283 = vld [vmem:[%s279 + $0x10] sm:$0xff]
        %v284 = vld [vmem:[%s279 + $0x18] sm:$0xff]
        %v285 = vld [vmem:[%s279 + $0x20] sm:$0xff]
        %v286 = vld [vmem:[%s279 + $0x28] sm:$0xff]
        %v287 = vld [vmem:[%s279 + $0x30] sm:$0xff]
        %v288 = vld [vmem:[%s279 + $0x38] sm:$0xff]
        %v289 = vld [vmem:[%s279 + $0x40] sm:$0xff]
        %v290 = vld [vmem:[%s279 + $0x48] sm:$0xff]
        %v291 = vld [vmem:[%s279 + $0x50] sm:$0xff]
        %v292 = vld [vmem:[%s279 + $0x58] sm:$0xff]
        %v293 = vld [vmem:[%s279 + $0x60] sm:$0xff]
        %v294 = vld [vmem:[%s279 + $0x68] sm:$0xff]
        %v295 = vld [vmem:[%s279 + $0x70] sm:$0xff]
        %v296 = vld [vmem:[%s279 + $0x78] sm:$0xff]
        %v297 = vld [vmem:[%s279 + $0x80] sm:$0xff]
        %v298 = vld [vmem:[%s279 + $0x88] sm:$0xff]
        %v299 = vld [vmem:[%s279 + $0x90] sm:$0xff]
        %v300 = vld [vmem:[%s279 + $0x98] sm:$0xff]
        %v301 = vld [vmem:[%s279 + $0xa0] sm:$0xff]
        %v302 = vld [vmem:[%s279 + $0xa8] sm:$0xff]
        %v303 = vld [vmem:[%s279 + $0xb0] sm:$0xff]
        %v304 = vld [vmem:[%s279 + $0xb8] sm:$0xff]
        %v305 = vld [vmem:[%s279 + $0xc0] sm:$0xff]
        %v306 = vld [vmem:[%s279 + $0xc8] sm:$0xff]
        %v307 = vld [vmem:[%s279 + $0xd0] sm:$0xff]
        %v308 = vld [vmem:[%s279 + $0xd8] sm:$0xff]
        %v309 = vld [vmem:[%s279 + $0xe0] sm:$0xff]
        %v310 = vld [vmem:[%s279 + $0xe8] sm:$0xff]
        %v311 = vld [vmem:[%s279 + $0xf0] sm:$0xff]
        %v312 = vld [vmem:[%s279 + $0xf8] sm:$0xff]
        %v313 = vld [vmem:[%s279 + $0x100] sm:$0xff]
        %v314 = vld [vmem:[%s279 + $0x108] sm:$0xff]
        %v315 = vld [vmem:[%s279 + $0x110] sm:$0xff]
        %v316 = vld [vmem:[%s279 + $0x118] sm:$0xff]
        %v317 = vld [vmem:[%s279 + $0x120] sm:$0xff]
        %v318 = vld [vmem:[%s279 + $0x128] sm:$0xff]
        %v319 = vld [vmem:[%s279 + $0x130] sm:$0xff]
        %v320 = vld [vmem:[%s279 + $0x138] sm:$0xff]
        %v321 = vld [vmem:[%s279 + $0x140] sm:$0xff]
        %v322 = vld [vmem:[%s279 + $0x148] sm:$0xff]
        %v323 = vld [vmem:[%s279 + $0x150] sm:$0xff]
        %v324 = vld [vmem:[%s279 + $0x158] sm:$0xff]
        %v325 = vld [vmem:[%s279 + $0x160] sm:$0xff]
        %v326 = vld [vmem:[%s279 + $0x168] sm:$0xff]
        %v327 = vld [vmem:[%s279 + $0x170] sm:$0xff]
        %v328 = vld [vmem:[%s279 + $0x178] sm:$0xff]
        %v329 = vld [vmem:[%s279 + $0x180] sm:$0xff]
        %v330 = vld [vmem:[%s279 + $0x188] sm:$0xff]
        %v331 = vld [vmem:[%s279 + $0x190] sm:$0xff]
        %v332 = vld [vmem:[%s279 + $0x198] sm:$0xff]
        %v333 = vld [vmem:[%s279 + $0x1a0] sm:$0xff]
        %v334 = vld [vmem:[%s279 + $0x1a8] sm:$0xff]
        %v335 = vld [vmem:[%s279 + $0x1b0] sm:$0xff]
        %v336 = vld [vmem:[%s279 + $0x1b8] sm:$0xff]
        %v337 = vld [vmem:[%s279 + $0x1c0] sm:$0xff]
        %v338 = vld [vmem:[%s279 + $0x1c8] sm:$0xff]
        %v339 = vld [vmem:[%s279 + $0x1d0] sm:$0xff]
        %v340 = vld [vmem:[%s279 + $0x1d8] sm:$0xff]
        %v341 = vld [vmem:[%s279 + $0x1e0] sm:$0xff]
        %v342 = vld [vmem:[%s279 + $0x1e8] sm:$0xff]
        %v343 = vld [vmem:[%s279 + $0x1f0] sm:$0xff]
        %v344 = vld [vmem:[%s279 + $0x1f8] sm:$0xff]
        %v345 = vld [vmem:[%s1] sm:$0xff]
        %v346 = vld [vmem:[%s1 + $0x8] sm:$0xff]
        %v347 = vld [vmem:[%s1 + $0x10] sm:$0xff]
        %v348 = vld [vmem:[%s1 + $0x18] sm:$0x1]
        %v349 = vld [vmem:[%s2] sm:$0x1]
        %v351 = vlaneseq
        %v352 = vshrl.u32 %v351, 7
        %v353 = vsub.s32 0, %v352
        %v354 = vrot.slane %v349, %v353
        %vm356 = vcmask 203776
        %v358 = vsel %vm356, %v281, 0
        %v361 = vsel %vm356, %v282, 0
        %v364 = vsel %vm356, %v283, 0
        %v367 = vsel %vm356, %v284, 0
        %v370 = vsel %vm356, %v285, 0
        %v373 = vsel %vm356, %v286, 0
        %v376 = vsel %vm356, %v287, 0
        %v379 = vsel %vm356, %v288, 0
        %v382 = vsel %vm356, %v289, 0
        %v385 = vsel %vm356, %v290, 0
        %v388 = vsel %vm356, %v291, 0
        %v391 = vsel %vm356, %v292, 0
        %v394 = vsel %vm356, %v293, 0
        %v397 = vsel %vm356, %v294, 0
        %v400 = vsel %vm356, %v295, 0
        %v403 = vsel %vm356, %v296, 0
        %v406 = vsel %vm356, %v297, 0
        %v409 = vsel %vm356, %v298, 0
        %v412 = vsel %vm356, %v299, 0
        %v415 = vsel %vm356, %v300, 0
        %v418 = vsel %vm356, %v301, 0
        %v421 = vsel %vm356, %v302, 0
        %v424 = vsel %vm356, %v303, 0
        %v427 = vsel %vm356, %v304, 0
        %v430 = vsel %vm356, %v305, 0
        %v433 = vsel %vm356, %v306, 0
        %v436 = vsel %vm356, %v307, 0
        %v439 = vsel %vm356, %v308, 0
        %v442 = vsel %vm356, %v309, 0
        %v445 = vsel %vm356, %v310, 0
        %v448 = vsel %vm356, %v311, 0
        %v451 = vsel %vm356, %v312, 0
        %v454 = vsel %vm356, %v313, 0
        %v457 = vsel %vm356, %v314, 0
        %v460 = vsel %vm356, %v315, 0
        %v463 = vsel %vm356, %v316, 0
        %v466 = vsel %vm356, %v317, 0
        %v469 = vsel %vm356, %v318, 0
        %v472 = vsel %vm356, %v319, 0
        %v475 = vsel %vm356, %v320, 0
        %v478 = vsel %vm356, %v321, 0
        %v481 = vsel %vm356, %v322, 0
        %v484 = vsel %vm356, %v323, 0
        %v487 = vsel %vm356, %v324, 0
        %v490 = vsel %vm356, %v325, 0
        %v493 = vsel %vm356, %v326, 0
        %v496 = vsel %vm356, %v327, 0
        %v499 = vsel %vm356, %v328, 0
        %v502 = vsel %vm356, %v329, 0
        %v505 = vsel %vm356, %v330, 0
        %v508 = vsel %vm356, %v331, 0
        %v511 = vsel %vm356, %v332, 0
        %v514 = vsel %vm356, %v333, 0
        %v517 = vsel %vm356, %v334, 0
        %v520 = vsel %vm356, %v335, 0
        %v523 = vsel %vm356, %v336, 0
        %v526 = vsel %vm356, %v337, 0
        %v529 = vsel %vm356, %v338, 0
        %v532 = vsel %vm356, %v339, 0
        %v535 = vsel %vm356, %v340, 0
        %v538 = vsel %vm356, %v341, 0
        %v541 = vsel %vm356, %v342, 0
        %v544 = vsel %vm356, %v343, 0
        %v547 = vsel %vm356, %v344, 0
        %vm549 = vcmask 1040384
        %v551 = vsel %vm549, %v348, 0
        %553 = vmatprep.subr.mxu0 0.0
        %554 = vmatpush1.msra.mxu0 0.0
        %555 = vmatprep.subr.mxu0 0.0
        %556 = vmatpush1.msra.mxu0 0.0
        %557 = vmatprep.subr.mxu0 0.0
        %558 = vmatpush1.msra.mxu0 0.0
        %559 = vmatprep.subr.mxu0 0.0
        %560 = vmatpush1.msra.mxu0 0.0
        %561 = vmatprep.subr.mxu0 0.0
        %562 = vmatpush1.msra.mxu0 0.0
        %563 = vmatprep.subr.mxu0 0.0
        %564 = vmatpush1.msra.mxu0 0.0
        %565 = vmatprep.subr.mxu0 0.0
        %566 = vmatpush1.msra.mxu0 0.0
        %567 = vmatprep.subr.mxu0 0.0
        %568 = vmatpush1.msra.mxu0 0.0
        %569 = vmatprep.subr.mxu0 0.0
        %570 = vmatpush1.msra.mxu0 0.0
        %571 = vmatprep.subr.mxu0 0.0
        %572 = vmatpush1.msra.mxu0 0.0
        %573 = vmatprep.subr.mxu0 0.0
        %574 = vmatpush1.msra.mxu0 0.0
        %575 = vmatprep.subr.mxu0 0.0
        %576 = vmatpush1.msra.mxu0 0.0
        %577 = vmatprep.subr.mxu0 0.0
        %578 = vmatpush1.msra.mxu0 %v551
        %579 = vmatprep.subr.mxu0 0.0
        %580 = vmatpush1.msra.mxu0 %v347
        %581 = vmatprep.subr.mxu0 0.0
        %582 = vmatpush1.msra.mxu0 %v346
        %583 = vmatprep.subr.mxu0 0.0
        %584 = vmatpush1.msra.mxu0 %v345
        %585 = vmatprep.subr.mxu0 0.0
        %586 = vmatpush2.msra.mxu0 0.0
        %587 = vmatprep.subr.mxu0 0.0
        %588 = vmatpush2.msra.mxu0 0.0
        %589 = vmatprep.subr.mxu0 0.0
        %590 = vmatpush2.msra.mxu0 0.0
        %591 = vmatprep.subr.mxu0 0.0
        %592 = vmatpush2.msra.mxu0 0.0
        %593 = vmatprep.subr.mxu0 0.0
        %594 = vmatpush2.msra.mxu0 0.0
        %595 = vmatprep.subr.mxu0 0.0
        %596 = vmatpush2.msra.mxu0 0.0
        %597 = vmatprep.subr.mxu0 0.0
        %598 = vmatpush2.msra.mxu0 0.0
        %599 = vmatprep.subr.mxu0 0.0
        %600 = vmatpush2.msra.mxu0 0.0
        %601 = vmatprep.subr.mxu0 0.0
        %602 = vmatpush2.msra.mxu0 0.0
        %603 = vmatprep.subr.mxu0 0.0
        %604 = vmatpush2.msra.mxu0 0.0
        %605 = vmatprep.subr.mxu0 0.0
        %606 = vmatpush2.msra.mxu0 0.0
        %607 = vmatprep.subr.mxu0 0.0
        %608 = vmatpush2.msra.mxu0 0.0
        %609 = vmatprep.subr.mxu0 0.0
        %610 = vmatpush2.msra.mxu0 0.0
        %611 = vmatprep.subr.mxu0 0.0
        %612 = vmatpush2.msra.mxu0 0.0
        %613 = vmatprep.subr.mxu0 0.0
        %614 = vmatpush2.msra.mxu0 0.0
        %615 = vmatprep.subr.mxu0 0.0
        %616 = vmatpush2.msra.mxu0 0.0
        %617 = vmatprep.mubr.f32.mxu0 0.0
        %618 = vmatmul.mubr.f32.gmra.mxu0 %v358
        %v619 = vpop.f32.mrf.mxu0
        %v620 = vadd.f32 %v354, %v619
        %v621 = vpop.f32.mrf.mxu0
        %622 = vmatprep.mubr.f32.mxu0 0.0
        %623 = vmatmul.mubr.f32.gmra.mxu0 %v361
        %v624 = vpop.f32.mrf.mxu0
        %v625 = vadd.f32 %v354, %v624
        %v626 = vpop.f32.mrf.mxu0
        %627 = vmatprep.mubr.f32.mxu0 0.0
        %628 = vmatmul.mubr.f32.gmra.mxu0 %v364
        %v629 = vpop.f32.mrf.mxu0
        %v630 = vadd.f32 %v354, %v629
        %v631 = vpop.f32.mrf.mxu0
        %632 = vmatprep.mubr.f32.mxu0 0.0
        %633 = vmatmul.mubr.f32.gmra.mxu0 %v367
        %v634 = vpop.f32.mrf.mxu0
        %v635 = vadd.f32 %v354, %v634
        %v636 = vpop.f32.mrf.mxu0
        %637 = vmatprep.mubr.f32.mxu0 0.0
        %638 = vmatmul.mubr.f32.gmra.mxu0 %v370
        %v639 = vpop.f32.mrf.mxu0
        %v640 = vadd.f32 %v354, %v639
        %v641 = vpop.f32.mrf.mxu0
        %642 = vmatprep.mubr.f32.mxu0 0.0
        %643 = vmatmul.mubr.f32.gmra.mxu0 %v373
        %v644 = vpop.f32.mrf.mxu0
        %v645 = vadd.f32 %v354, %v644
        %v646 = vpop.f32.mrf.mxu0
        %647 = vmatprep.mubr.f32.mxu0 0.0
        %648 = vmatmul.mubr.f32.gmra.mxu0 %v376
        %v649 = vpop.f32.mrf.mxu0
        %v650 = vadd.f32 %v354, %v649
        %v651 = vpop.f32.mrf.mxu0
        %652 = vmatprep.mubr.f32.mxu0 0.0
        %653 = vmatmul.mubr.f32.gmra.mxu0 %v379
        %v654 = vpop.f32.mrf.mxu0
        %v655 = vadd.f32 %v354, %v654
        %v656 = vpop.f32.mrf.mxu0
        %657 = vmatprep.mubr.f32.mxu0 0.0
        %658 = vmatmul.mubr.f32.gmra.mxu0 %v382
        %v659 = vpop.f32.mrf.mxu0
        %v660 = vadd.f32 %v354, %v659
        %v661 = vpop.f32.mrf.mxu0
        %662 = vmatprep.mubr.f32.mxu0 0.0
        %663 = vmatmul.mubr.f32.gmra.mxu0 %v385
        %v664 = vpop.f32.mrf.mxu0
        %v665 = vadd.f32 %v354, %v664
        %v666 = vpop.f32.mrf.mxu0
        %667 = vmatprep.mubr.f32.mxu0 0.0
        %668 = vmatmul.mubr.f32.gmra.mxu0 %v388
        %v669 = vpop.f32.mrf.mxu0
        %v670 = vadd.f32 %v354, %v669
        %v671 = vpop.f32.mrf.mxu0
        %672 = vmatprep.mubr.f32.mxu0 0.0
        %673 = vmatmul.mubr.f32.gmra.mxu0 %v391
        %v674 = vpop.f32.mrf.mxu0
        %v675 = vadd.f32 %v354, %v674
        %v676 = vpop.f32.mrf.mxu0
        %677 = vmatprep.mubr.f32.mxu0 0.0
        %678 = vmatmul.mubr.f32.gmra.mxu0 %v394
        %v679 = vpop.f32.mrf.mxu0
        %v680 = vadd.f32 %v354, %v679
        %v681 = vpop.f32.mrf.mxu0
        %682 = vmatprep.mubr.f32.mxu0 0.0
        %683 = vmatmul.mubr.f32.gmra.mxu0 %v397
        %v684 = vpop.f32.mrf.mxu0
        %v685 = vadd.f32 %v354, %v684
        %v686 = vpop.f32.mrf.mxu0
        %687 = vmatprep.mubr.f32.mxu0 0.0
        %688 = vmatmul.mubr.f32.gmra.mxu0 %v400
        %v689 = vpop.f32.mrf.mxu0
        %v690 = vadd.f32 %v354, %v689
        %v691 = vpop.f32.mrf.mxu0
        %692 = vmatprep.mubr.f32.mxu0 0.0
        %693 = vmatmul.mubr.f32.gmra.mxu0 %v403
        %v694 = vpop.f32.mrf.mxu0
        %v695 = vadd.f32 %v354, %v694
        %v696 = vpop.f32.mrf.mxu0
        %697 = vmatprep.mubr.f32.mxu0 0.0
        %698 = vmatmul.mubr.f32.gmra.mxu0 %v406
        %v699 = vpop.f32.mrf.mxu0
        %v700 = vadd.f32 %v354, %v699
        %v701 = vpop.f32.mrf.mxu0
        %702 = vmatprep.mubr.f32.mxu0 0.0
        %703 = vmatmul.mubr.f32.gmra.mxu0 %v409
        %v704 = vpop.f32.mrf.mxu0
        %v705 = vadd.f32 %v354, %v704
        %v706 = vpop.f32.mrf.mxu0
        %707 = vmatprep.mubr.f32.mxu0 0.0
        %708 = vmatmul.mubr.f32.gmra.mxu0 %v412
        %v709 = vpop.f32.mrf.mxu0
        %v710 = vadd.f32 %v354, %v709
        %v711 = vpop.f32.mrf.mxu0
        %712 = vmatprep.mubr.f32.mxu0 0.0
        %713 = vmatmul.mubr.f32.gmra.mxu0 %v415
        %v714 = vpop.f32.mrf.mxu0
        %v715 = vadd.f32 %v354, %v714
        %v716 = vpop.f32.mrf.mxu0
        %717 = vmatprep.mubr.f32.mxu0 0.0
        %718 = vmatmul.mubr.f32.gmra.mxu0 %v418
        %v719 = vpop.f32.mrf.mxu0
        %v720 = vadd.f32 %v354, %v719
        %v721 = vpop.f32.mrf.mxu0
        %722 = vmatprep.mubr.f32.mxu0 0.0
        %723 = vmatmul.mubr.f32.gmra.mxu0 %v421
        %v724 = vpop.f32.mrf.mxu0
        %v725 = vadd.f32 %v354, %v724
        %v726 = vpop.f32.mrf.mxu0
        %727 = vmatprep.mubr.f32.mxu0 0.0
        %728 = vmatmul.mubr.f32.gmra.mxu0 %v424
        %v729 = vpop.f32.mrf.mxu0
        %v730 = vadd.f32 %v354, %v729
        %v731 = vpop.f32.mrf.mxu0
        %732 = vmatprep.mubr.f32.mxu0 0.0
        %733 = vmatmul.mubr.f32.gmra.mxu0 %v427
        %v734 = vpop.f32.mrf.mxu0
        %v735 = vadd.f32 %v354, %v734
        %v736 = vpop.f32.mrf.mxu0
        %737 = vmatprep.mubr.f32.mxu0 0.0
        %738 = vmatmul.mubr.f32.gmra.mxu0 %v430
        %v739 = vpop.f32.mrf.mxu0
        %v740 = vadd.f32 %v354, %v739
        %v741 = vpop.f32.mrf.mxu0
        %742 = vmatprep.mubr.f32.mxu0 0.0
        %743 = vmatmul.mubr.f32.gmra.mxu0 %v433
        %v744 = vpop.f32.mrf.mxu0
        %v745 = vadd.f32 %v354, %v744
        %v746 = vpop.f32.mrf.mxu0
        %747 = vmatprep.mubr.f32.mxu0 0.0
        %748 = vmatmul.mubr.f32.gmra.mxu0 %v436
        %v749 = vpop.f32.mrf.mxu0
        %v750 = vadd.f32 %v354, %v749
        %v751 = vpop.f32.mrf.mxu0
        %752 = vmatprep.mubr.f32.mxu0 0.0
        %753 = vmatmul.mubr.f32.gmra.mxu0 %v439
        %v754 = vpop.f32.mrf.mxu0
        %v755 = vadd.f32 %v354, %v754
        %v756 = vpop.f32.mrf.mxu0
        %757 = vmatprep.mubr.f32.mxu0 0.0
        %758 = vmatmul.mubr.f32.gmra.mxu0 %v442
        %v759 = vpop.f32.mrf.mxu0
        %v760 = vadd.f32 %v354, %v759
        %v761 = vpop.f32.mrf.mxu0
        %762 = vmatprep.mubr.f32.mxu0 0.0
        %763 = vmatmul.mubr.f32.gmra.mxu0 %v445
        %v764 = vpop.f32.mrf.mxu0
        %v765 = vadd.f32 %v354, %v764
        %v766 = vpop.f32.mrf.mxu0
        %767 = vmatprep.mubr.f32.mxu0 0.0
        %768 = vmatmul.mubr.f32.gmra.mxu0 %v448
        %v769 = vpop.f32.mrf.mxu0
        %v770 = vadd.f32 %v354, %v769
        %v771 = vpop.f32.mrf.mxu0
        %772 = vmatprep.mubr.f32.mxu0 0.0
        %773 = vmatmul.mubr.f32.gmra.mxu0 %v451
        %v774 = vpop.f32.mrf.mxu0
        %v775 = vadd.f32 %v354, %v774
        %v776 = vpop.f32.mrf.mxu0
        %777 = vmatprep.mubr.f32.mxu0 0.0
        %778 = vmatmul.mubr.f32.gmra.mxu0 %v454
        %v779 = vpop.f32.mrf.mxu0
        %v780 = vadd.f32 %v354, %v779
        %v781 = vpop.f32.mrf.mxu0
        %782 = vmatprep.mubr.f32.mxu0 0.0
        %783 = vmatmul.mubr.f32.gmra.mxu0 %v457
        %v784 = vpop.f32.mrf.mxu0
        %v785 = vadd.f32 %v354, %v784
        %v786 = vpop.f32.mrf.mxu0
        %787 = vmatprep.mubr.f32.mxu0 0.0
        %788 = vmatmul.mubr.f32.gmra.mxu0 %v460
        %v789 = vpop.f32.mrf.mxu0
        %v790 = vadd.f32 %v354, %v789
        %v791 = vpop.f32.mrf.mxu0
        %792 = vmatprep.mubr.f32.mxu0 0.0
        %793 = vmatmul.mubr.f32.gmra.mxu0 %v463
        %v794 = vpop.f32.mrf.mxu0
        %v795 = vadd.f32 %v354, %v794
        %v796 = vpop.f32.mrf.mxu0
        %797 = vmatprep.mubr.f32.mxu0 0.0
        %798 = vmatmul.mubr.f32.gmra.mxu0 %v466
        %v799 = vpop.f32.mrf.mxu0
        %v800 = vadd.f32 %v354, %v799
        %v801 = vpop.f32.mrf.mxu0
        %802 = vmatprep.mubr.f32.mxu0 0.0
        %803 = vmatmul.mubr.f32.gmra.mxu0 %v469
        %v804 = vpop.f32.mrf.mxu0
        %v805 = vadd.f32 %v354, %v804
        %v806 = vpop.f32.mrf.mxu0
        %807 = vmatprep.mubr.f32.mxu0 0.0
        %808 = vmatmul.mubr.f32.gmra.mxu0 %v472
        %v809 = vpop.f32.mrf.mxu0
        %v810 = vadd.f32 %v354, %v809
        %v811 = vpop.f32.mrf.mxu0
        %812 = vmatprep.mubr.f32.mxu0 0.0
        %813 = vmatmul.mubr.f32.gmra.mxu0 %v475
        %v814 = vpop.f32.mrf.mxu0
        %v815 = vadd.f32 %v354, %v814
        %v816 = vpop.f32.mrf.mxu0
        %817 = vmatprep.mubr.f32.mxu0 0.0
        %818 = vmatmul.mubr.f32.gmra.mxu0 %v478
        %v819 = vpop.f32.mrf.mxu0
        %v820 = vadd.f32 %v354, %v819
        %v821 = vpop.f32.mrf.mxu0
        %822 = vmatprep.mubr.f32.mxu0 0.0
        %823 = vmatmul.mubr.f32.gmra.mxu0 %v481
        %v824 = vpop.f32.mrf.mxu0
        %v825 = vadd.f32 %v354, %v824
        %v826 = vpop.f32.mrf.mxu0
        %827 = vmatprep.mubr.f32.mxu0 0.0
        %828 = vmatmul.mubr.f32.gmra.mxu0 %v484
        %v829 = vpop.f32.mrf.mxu0
        %v830 = vadd.f32 %v354, %v829
        %v831 = vpop.f32.mrf.mxu0
        %832 = vmatprep.mubr.f32.mxu0 0.0
        %833 = vmatmul.mubr.f32.gmra.mxu0 %v487
        %v834 = vpop.f32.mrf.mxu0
        %v835 = vadd.f32 %v354, %v834
        %v836 = vpop.f32.mrf.mxu0
        %837 = vmatprep.mubr.f32.mxu0 0.0
        %838 = vmatmul.mubr.f32.gmra.mxu0 %v490
        %v839 = vpop.f32.mrf.mxu0
        %v840 = vadd.f32 %v354, %v839
        %v841 = vpop.f32.mrf.mxu0
        %842 = vmatprep.mubr.f32.mxu0 0.0
        %843 = vmatmul.mubr.f32.gmra.mxu0 %v493
        %v844 = vpop.f32.mrf.mxu0
        %v845 = vadd.f32 %v354, %v844
        %v846 = vpop.f32.mrf.mxu0
        %847 = vmatprep.mubr.f32.mxu0 0.0
        %848 = vmatmul.mubr.f32.gmra.mxu0 %v496
        %v849 = vpop.f32.mrf.mxu0
        %v850 = vadd.f32 %v354, %v849
        %v851 = vpop.f32.mrf.mxu0
        %852 = vmatprep.mubr.f32.mxu0 0.0
        %853 = vmatmul.mubr.f32.gmra.mxu0 %v499
        %v854 = vpop.f32.mrf.mxu0
        %v855 = vadd.f32 %v354, %v854
        %v856 = vpop.f32.mrf.mxu0
        %857 = vmatprep.mubr.f32.mxu0 0.0
        %858 = vmatmul.mubr.f32.gmra.mxu0 %v502
        %v859 = vpop.f32.mrf.mxu0
        %v860 = vadd.f32 %v354, %v859
        %v861 = vpop.f32.mrf.mxu0
        %862 = vmatprep.mubr.f32.mxu0 0.0
        %863 = vmatmul.mubr.f32.gmra.mxu0 %v505
        %v864 = vpop.f32.mrf.mxu0
        %v865 = vadd.f32 %v354, %v864
        %v866 = vpop.f32.mrf.mxu0
        %867 = vmatprep.mubr.f32.mxu0 0.0
        %868 = vmatmul.mubr.f32.gmra.mxu0 %v508
        %v869 = vpop.f32.mrf.mxu0
        %v870 = vadd.f32 %v354, %v869
        %v871 = vpop.f32.mrf.mxu0
        %872 = vmatprep.mubr.f32.mxu0 0.0
        %873 = vmatmul.mubr.f32.gmra.mxu0 %v511
        %v874 = vpop.f32.mrf.mxu0
        %v875 = vadd.f32 %v354, %v874
        %v876 = vpop.f32.mrf.mxu0
        %877 = vmatprep.mubr.f32.mxu0 0.0
        %878 = vmatmul.mubr.f32.gmra.mxu0 %v514
        %v879 = vpop.f32.mrf.mxu0
        %v880 = vadd.f32 %v354, %v879
        %v881 = vpop.f32.mrf.mxu0
        %882 = vmatprep.mubr.f32.mxu0 0.0
        %883 = vmatmul.mubr.f32.gmra.mxu0 %v517
        %v884 = vpop.f32.mrf.mxu0
        %v885 = vadd.f32 %v354, %v884
        %v886 = vpop.f32.mrf.mxu0
        %887 = vmatprep.mubr.f32.mxu0 0.0
        %888 = vmatmul.mubr.f32.gmra.mxu0 %v520
        %v889 = vpop.f32.mrf.mxu0
        %v890 = vadd.f32 %v354, %v889
        %v891 = vpop.f32.mrf.mxu0
        %892 = vmatprep.mubr.f32.mxu0 0.0
        %893 = vmatmul.mubr.f32.gmra.mxu0 %v523
        %v894 = vpop.f32.mrf.mxu0
        %v895 = vadd.f32 %v354, %v894
        %v896 = vpop.f32.mrf.mxu0
        %897 = vmatprep.mubr.f32.mxu0 0.0
        %898 = vmatmul.mubr.f32.gmra.mxu0 %v526
        %v899 = vpop.f32.mrf.mxu0
        %v900 = vadd.f32 %v354, %v899
        %v901 = vpop.f32.mrf.mxu0
        %902 = vmatprep.mubr.f32.mxu0 0.0
        %903 = vmatmul.mubr.f32.gmra.mxu0 %v529
        %v904 = vpop.f32.mrf.mxu0
        %v905 = vadd.f32 %v354, %v904
        %v906 = vpop.f32.mrf.mxu0
        %907 = vmatprep.mubr.f32.mxu0 0.0
        %908 = vmatmul.mubr.f32.gmra.mxu0 %v532
        %v909 = vpop.f32.mrf.mxu0
        %v910 = vadd.f32 %v354, %v909
        %v911 = vpop.f32.mrf.mxu0
        %912 = vmatprep.mubr.f32.mxu0 0.0
        %913 = vmatmul.mubr.f32.gmra.mxu0 %v535
        %v914 = vpop.f32.mrf.mxu0
        %v915 = vadd.f32 %v354, %v914
        %v916 = vpop.f32.mrf.mxu0
        %917 = vmatprep.mubr.f32.mxu0 0.0
        %918 = vmatmul.mubr.f32.gmra.mxu0 %v538
        %v919 = vpop.f32.mrf.mxu0
        %v920 = vadd.f32 %v354, %v919
        %v921 = vpop.f32.mrf.mxu0
        %922 = vmatprep.mubr.f32.mxu0 0.0
        %923 = vmatmul.mubr.f32.gmra.mxu0 %v541
        %v924 = vpop.f32.mrf.mxu0
        %v925 = vadd.f32 %v354, %v924
        %v926 = vpop.f32.mrf.mxu0
        %927 = vmatprep.mubr.f32.mxu0 0.0
        %928 = vmatmul.mubr.f32.gmra.mxu0 %v544
        %v929 = vpop.f32.mrf.mxu0
        %v930 = vadd.f32 %v354, %v929
        %v931 = vpop.f32.mrf.mxu0
        %932 = vmatprep.mubr.f32.mxu0 0.0
        %933 = vmatmul.mubr.f32.gmra.mxu0 %v547
        %v934 = vpop.f32.mrf.mxu0
        %v935 = vadd.f32 %v354, %v934
        %v936 = vpop.f32.mrf.mxu0
        %937 = vdwg.mxu0
        %v938 = vmax.f32 %v620, 0.0
        %v939 = vmax.f32 %v625, 0.0
        %v940 = vmax.f32 %v630, 0.0
        %v941 = vmax.f32 %v635, 0.0
        %v942 = vmax.f32 %v640, 0.0
        %v943 = vmax.f32 %v645, 0.0
        %v944 = vmax.f32 %v650, 0.0
        %v945 = vmax.f32 %v655, 0.0
        %v946 = vmax.f32 %v660, 0.0
        %v947 = vmax.f32 %v665, 0.0
        %v948 = vmax.f32 %v670, 0.0
        %v949 = vmax.f32 %v675, 0.0
        %v950 = vmax.f32 %v680, 0.0
        %v951 = vmax.f32 %v685, 0.0
        %v952 = vmax.f32 %v690, 0.0
        %v953 = vmax.f32 %v695, 0.0
        %v954 = vmax.f32 %v700, 0.0
        %v955 = vmax.f32 %v705, 0.0
        %v956 = vmax.f32 %v710, 0.0
        %v957 = vmax.f32 %v715, 0.0
        %v958 = vmax.f32 %v720, 0.0
        %v959 = vmax.f32 %v725, 0.0
        %v960 = vmax.f32 %v730, 0.0
        %v961 = vmax.f32 %v735, 0.0
        %v962 = vmax.f32 %v740, 0.0
        %v963 = vmax.f32 %v745, 0.0
        %v964 = vmax.f32 %v750, 0.0
        %v965 = vmax.f32 %v755, 0.0
        %v966 = vmax.f32 %v760, 0.0
        %v967 = vmax.f32 %v765, 0.0
        %v968 = vmax.f32 %v770, 0.0
        %v969 = vmax.f32 %v775, 0.0
        %v970 = vmax.f32 %v780, 0.0
        %v971 = vmax.f32 %v785, 0.0
        %v972 = vmax.f32 %v790, 0.0
        %v973 = vmax.f32 %v795, 0.0
        %v974 = vmax.f32 %v800, 0.0
        %v975 = vmax.f32 %v805, 0.0
        %v976 = vmax.f32 %v810, 0.0
        %v977 = vmax.f32 %v815, 0.0
        %v978 = vmax.f32 %v820, 0.0
        %v979 = vmax.f32 %v825, 0.0
        %v980 = vmax.f32 %v830, 0.0
        %v981 = vmax.f32 %v835, 0.0
        %v982 = vmax.f32 %v840, 0.0
        %v983 = vmax.f32 %v845, 0.0
        %v984 = vmax.f32 %v850, 0.0
        %v985 = vmax.f32 %v855, 0.0
        %v986 = vmax.f32 %v860, 0.0
        %v987 = vmax.f32 %v865, 0.0
        %v988 = vmax.f32 %v870, 0.0
        %v989 = vmax.f32 %v875, 0.0
        %v990 = vmax.f32 %v880, 0.0
        %v991 = vmax.f32 %v885, 0.0
        %v992 = vmax.f32 %v890, 0.0
        %v993 = vmax.f32 %v895, 0.0
        %v994 = vmax.f32 %v900, 0.0
        %v995 = vmax.f32 %v905, 0.0
        %v996 = vmax.f32 %v910, 0.0
        %v997 = vmax.f32 %v915, 0.0
        %v998 = vmax.f32 %v920, 0.0
        %v999 = vmax.f32 %v925, 0.0
        %v1000 = vmax.f32 %v930, 0.0
        %v1001 = vmax.f32 %v935, 0.0
        %v1002 = vld [vmem:[%s3] sm:$0xff]
        %v1003 = vld [vmem:[%s3 + $0x8] sm:$0xff]
        %v1004 = vld [vmem:[%s3 + $0x10] sm:$0xff]
        %v1005 = vld [vmem:[%s3 + $0x18] sm:$0xff]
        %v1006 = vld [vmem:[%s3 + $0x20] sm:$0xff]
        %v1007 = vld [vmem:[%s3 + $0x28] sm:$0xff]
        %v1008 = vld [vmem:[%s3 + $0x30] sm:$0xff]
        %v1009 = vld [vmem:[%s3 + $0x38] sm:$0xff]
        %v1010 = vld [vmem:[%s4] sm:$0x1]
        %v1012 = vlaneseq
        %v1013 = vshrl.u32 %v1012, 7
        %v1014 = vsub.s32 0, %v1013
        %v1015 = vrot.slane %v1010, %v1014
        %vm1017 = vcmask 523264
        %v1019 = vsel %vm1017, %v938, 0
        %v1022 = vsel %vm1017, %v939, 0
        %v1025 = vsel %vm1017, %v940, 0
        %v1028 = vsel %vm1017, %v941, 0
        %v1031 = vsel %vm1017, %v942, 0
        %v1034 = vsel %vm1017, %v943, 0
        %v1037 = vsel %vm1017, %v944, 0
        %v1040 = vsel %vm1017, %v945, 0
        %v1043 = vsel %vm1017, %v946, 0
        %v1046 = vsel %vm1017, %v947, 0
        %v1049 = vsel %vm1017, %v948, 0
        %v1052 = vsel %vm1017, %v949, 0
        %v1055 = vsel %vm1017, %v950, 0
        %v1058 = vsel %vm1017, %v951, 0
        %v1061 = vsel %vm1017, %v952, 0
        %v1064 = vsel %vm1017, %v953, 0
        %v1067 = vsel %vm1017, %v954, 0
        %v1070 = vsel %vm1017, %v955, 0
        %v1073 = vsel %vm1017, %v956, 0
        %v1076 = vsel %vm1017, %v957, 0
        %v1079 = vsel %vm1017, %v958, 0
        %v1082 = vsel %vm1017, %v959, 0
        %v1085 = vsel %vm1017, %v960, 0
        %v1088 = vsel %vm1017, %v961, 0
        %v1091 = vsel %vm1017, %v962, 0
        %v1094 = vsel %vm1017, %v963, 0
        %v1097 = vsel %vm1017, %v964, 0
        %v1100 = vsel %vm1017, %v965, 0
        %v1103 = vsel %vm1017, %v966, 0
        %v1106 = vsel %vm1017, %v967, 0
        %v1109 = vsel %vm1017, %v968, 0
        %v1112 = vsel %vm1017, %v969, 0
        %v1115 = vsel %vm1017, %v970, 0
        %v1118 = vsel %vm1017, %v971, 0
        %v1121 = vsel %vm1017, %v972, 0
        %v1124 = vsel %vm1017, %v973, 0
        %v1127 = vsel %vm1017, %v974, 0
        %v1130 = vsel %vm1017, %v975, 0
        %v1133 = vsel %vm1017, %v976, 0
        %v1136 = vsel %vm1017, %v977, 0
        %v1139 = vsel %vm1017, %v978, 0
        %v1142 = vsel %vm1017, %v979, 0
        %v1145 = vsel %vm1017, %v980, 0
        %v1148 = vsel %vm1017, %v981, 0
        %v1151 = vsel %vm1017, %v982, 0
        %v1154 = vsel %vm1017, %v983, 0
        %v1157 = vsel %vm1017, %v984, 0
        %v1160 = vsel %vm1017, %v985, 0
        %v1163 = vsel %vm1017, %v986, 0
        %v1166 = vsel %vm1017, %v987, 0
        %v1169 = vsel %vm1017, %v988, 0
        %v1172 = vsel %vm1017, %v989, 0
        %v1175 = vsel %vm1017, %v990, 0
        %v1178 = vsel %vm1017, %v991, 0
        %v1181 = vsel %vm1017, %v992, 0
        %v1184 = vsel %vm1017, %v993, 0
        %v1187 = vsel %vm1017, %v994, 0
        %v1190 = vsel %vm1017, %v995, 0
        %v1193 = vsel %vm1017, %v996, 0
        %v1196 = vsel %vm1017, %v997, 0
        %v1199 = vsel %vm1017, %v998, 0
        %v1202 = vsel %vm1017, %v999, 0
        %v1205 = vsel %vm1017, %v1000, 0
        %v1208 = vsel %vm1017, %v1001, 0
        %1210 = vmatprep.subr.mxu0 0.0
        %1211 = vmatpush1.msra.mxu0 0.0
        %1212 = vmatprep.subr.mxu0 0.0
        %1213 = vmatpush1.msra.mxu0 0.0
        %1214 = vmatprep.subr.mxu0 0.0
        %1215 = vmatpush1.msra.mxu0 0.0
        %1216 = vmatprep.subr.mxu0 0.0
        %1217 = vmatpush1.msra.mxu0 0.0
        %1218 = vmatprep.subr.mxu0 0.0
        %1219 = vmatpush1.msra.mxu0 0.0
        %1220 = vmatprep.subr.mxu0 0.0
        %1221 = vmatpush1.msra.mxu0 0.0
        %1222 = vmatprep.subr.mxu0 0.0
        %1223 = vmatpush1.msra.mxu0 0.0
        %1224 = vmatprep.subr.mxu0 0.0
        %1225 = vmatpush1.msra.mxu0 0.0
        %1226 = vmatprep.subr.mxu0 0.0
        %1227 = vmatpush1.msra.mxu0 %v1009
        %1228 = vmatprep.subr.mxu0 0.0
        %1229 = vmatpush1.msra.mxu0 %v1008
        %1230 = vmatprep.subr.mxu0 0.0
        %1231 = vmatpush1.msra.mxu0 %v1007
        %1232 = vmatprep.subr.mxu0 0.0
        %1233 = vmatpush1.msra.mxu0 %v1006
        %1234 = vmatprep.subr.mxu0 0.0
        %1235 = vmatpush1.msra.mxu0 %v1005
        %1236 = vmatprep.subr.mxu0 0.0
        %1237 = vmatpush1.msra.mxu0 %v1004
        %1238 = vmatprep.subr.mxu0 0.0
        %1239 = vmatpush1.msra.mxu0 %v1003
        %1240 = vmatprep.subr.mxu0 0.0
        %1241 = vmatpush1.msra.mxu0 %v1002
        %1242 = vmatprep.subr.mxu0 0.0
        %1243 = vmatpush2.msra.mxu0 0.0
        %1244 = vmatprep.subr.mxu0 0.0
        %1245 = vmatpush2.msra.mxu0 0.0
        %1246 = vmatprep.subr.mxu0 0.0
        %1247 = vmatpush2.msra.mxu0 0.0
        %1248 = vmatprep.subr.mxu0 0.0
        %1249 = vmatpush2.msra.mxu0 0.0
        %1250 = vmatprep.subr.mxu0 0.0
        %1251 = vmatpush2.msra.mxu0 0.0
        %1252 = vmatprep.subr.mxu0 0.0
        %1253 = vmatpush2.msra.mxu0 0.0
        %1254 = vmatprep.subr.mxu0 0.0
        %1255 = vmatpush2.msra.mxu0 0.0
        %1256 = vmatprep.subr.mxu0 0.0
        %1257 = vmatpush2.msra.mxu0 0.0
        %1258 = vmatprep.subr.mxu0 0.0
        %1259 = vmatpush2.msra.mxu0 0.0
        %1260 = vmatprep.subr.mxu0 0.0
        %1261 = vmatpush2.msra.mxu0 0.0
        %1262 = vmatprep.subr.mxu0 0.0
        %1263 = vmatpush2.msra.mxu0 0.0
        %1264 = vmatprep.subr.mxu0 0.0
        %1265 = vmatpush2.msra.mxu0 0.0
        %1266 = vmatprep.subr.mxu0 0.0
        %1267 = vmatpush2.msra.mxu0 0.0
        %1268 = vmatprep.subr.mxu0 0.0
        %1269 = vmatpush2.msra.mxu0 0.0
        %1270 = vmatprep.subr.mxu0 0.0
        %1271 = vmatpush2.msra.mxu0 0.0
        %1272 = vmatprep.subr.mxu0 0.0
        %1273 = vmatpush2.msra.mxu0 0.0
        %1274 = vmatprep.mubr.f32.mxu0 0.0
        %1275 = vmatmul.mubr.f32.gmra.mxu0 %v1019
        %v1276 = vpop.f32.mrf.mxu0
        %v1277 = vadd.f32 %v1015, %v1276
        %v1278 = vpop.f32.mrf.mxu0
        %1279 = vmatprep.mubr.f32.mxu0 0.0
        %1280 = vmatmul.mubr.f32.gmra.mxu0 %v1022
        %v1281 = vpop.f32.mrf.mxu0
        %v1282 = vadd.f32 %v1015, %v1281
        %v1283 = vpop.f32.mrf.mxu0
        %1284 = vmatprep.mubr.f32.mxu0 0.0
        %1285 = vmatmul.mubr.f32.gmra.mxu0 %v1025
        %v1286 = vpop.f32.mrf.mxu0
        %v1287 = vadd.f32 %v1015, %v1286
        %v1288 = vpop.f32.mrf.mxu0
        %1289 = vmatprep.mubr.f32.mxu0 0.0
        %1290 = vmatmul.mubr.f32.gmra.mxu0 %v1028
        %v1291 = vpop.f32.mrf.mxu0
        %v1292 = vadd.f32 %v1015, %v1291
        %v1293 = vpop.f32.mrf.mxu0
        %1294 = vmatprep.mubr.f32.mxu0 0.0
        %1295 = vmatmul.mubr.f32.gmra.mxu0 %v1031
        %v1296 = vpop.f32.mrf.mxu0
        %v1297 = vadd.f32 %v1015, %v1296
        %v1298 = vpop.f32.mrf.mxu0
        %1299 = vmatprep.mubr.f32.mxu0 0.0
        %1300 = vmatmul.mubr.f32.gmra.mxu0 %v1034
        %v1301 = vpop.f32.mrf.mxu0
        %v1302 = vadd.f32 %v1015, %v1301
        %v1303 = vpop.f32.mrf.mxu0
        %1304 = vmatprep.mubr.f32.mxu0 0.0
        %1305 = vmatmul.mubr.f32.gmra.mxu0 %v1037
        %v1306 = vpop.f32.mrf.mxu0
        %v1307 = vadd.f32 %v1015, %v1306
        %v1308 = vpop.f32.mrf.mxu0
        %1309 = vmatprep.mubr.f32.mxu0 0.0
        %1310 = vmatmul.mubr.f32.gmra.mxu0 %v1040
        %v1311 = vpop.f32.mrf.mxu0
        %v1312 = vadd.f32 %v1015, %v1311
        %v1313 = vpop.f32.mrf.mxu0
        %1314 = vmatprep.mubr.f32.mxu0 0.0
        %1315 = vmatmul.mubr.f32.gmra.mxu0 %v1043
        %v1316 = vpop.f32.mrf.mxu0
        %v1317 = vadd.f32 %v1015, %v1316
        %v1318 = vpop.f32.mrf.mxu0
        %1319 = vmatprep.mubr.f32.mxu0 0.0
        %1320 = vmatmul.mubr.f32.gmra.mxu0 %v1046
        %v1321 = vpop.f32.mrf.mxu0
        %v1322 = vadd.f32 %v1015, %v1321
        %v1323 = vpop.f32.mrf.mxu0
        %1324 = vmatprep.mubr.f32.mxu0 0.0
        %1325 = vmatmul.mubr.f32.gmra.mxu0 %v1049
        %v1326 = vpop.f32.mrf.mxu0
        %v1327 = vadd.f32 %v1015, %v1326
        %v1328 = vpop.f32.mrf.mxu0
        %1329 = vmatprep.mubr.f32.mxu0 0.0
        %1330 = vmatmul.mubr.f32.gmra.mxu0 %v1052
        %v1331 = vpop.f32.mrf.mxu0
        %v1332 = vadd.f32 %v1015, %v1331
        %v1333 = vpop.f32.mrf.mxu0
        %1334 = vmatprep.mubr.f32.mxu0 0.0
        %1335 = vmatmul.mubr.f32.gmra.mxu0 %v1055
        %v1336 = vpop.f32.mrf.mxu0
        %v1337 = vadd.f32 %v1015, %v1336
        %v1338 = vpop.f32.mrf.mxu0
        %1339 = vmatprep.mubr.f32.mxu0 0.0
        %1340 = vmatmul.mubr.f32.gmra.mxu0 %v1058
        %v1341 = vpop.f32.mrf.mxu0
        %v1342 = vadd.f32 %v1015, %v1341
        %v1343 = vpop.f32.mrf.mxu0
        %1344 = vmatprep.mubr.f32.mxu0 0.0
        %1345 = vmatmul.mubr.f32.gmra.mxu0 %v1061
        %v1346 = vpop.f32.mrf.mxu0
        %v1347 = vadd.f32 %v1015, %v1346
        %v1348 = vpop.f32.mrf.mxu0
        %1349 = vmatprep.mubr.f32.mxu0 0.0
        %1350 = vmatmul.mubr.f32.gmra.mxu0 %v1064
        %v1351 = vpop.f32.mrf.mxu0
        %v1352 = vadd.f32 %v1015, %v1351
        %v1353 = vpop.f32.mrf.mxu0
        %1354 = vmatprep.mubr.f32.mxu0 0.0
        %1355 = vmatmul.mubr.f32.gmra.mxu0 %v1067
        %v1356 = vpop.f32.mrf.mxu0
        %v1357 = vadd.f32 %v1015, %v1356
        %v1358 = vpop.f32.mrf.mxu0
        %1359 = vmatprep.mubr.f32.mxu0 0.0
        %1360 = vmatmul.mubr.f32.gmra.mxu0 %v1070
        %v1361 = vpop.f32.mrf.mxu0
        %v1362 = vadd.f32 %v1015, %v1361
        %v1363 = vpop.f32.mrf.mxu0
        %1364 = vmatprep.mubr.f32.mxu0 0.0
        %1365 = vmatmul.mubr.f32.gmra.mxu0 %v1073
        %v1366 = vpop.f32.mrf.mxu0
        %v1367 = vadd.f32 %v1015, %v1366
        %v1368 = vpop.f32.mrf.mxu0
        %1369 = vmatprep.mubr.f32.mxu0 0.0
        %1370 = vmatmul.mubr.f32.gmra.mxu0 %v1076
        %v1371 = vpop.f32.mrf.mxu0
        %v1372 = vadd.f32 %v1015, %v1371
        %v1373 = vpop.f32.mrf.mxu0
        %1374 = vmatprep.mubr.f32.mxu0 0.0
        %1375 = vmatmul.mubr.f32.gmra.mxu0 %v1079
        %v1376 = vpop.f32.mrf.mxu0
        %v1377 = vadd.f32 %v1015, %v1376
        %v1378 = vpop.f32.mrf.mxu0
        %1379 = vmatprep.mubr.f32.mxu0 0.0
        %1380 = vmatmul.mubr.f32.gmra.mxu0 %v1082
        %v1381 = vpop.f32.mrf.mxu0
        %v1382 = vadd.f32 %v1015, %v1381
        %v1383 = vpop.f32.mrf.mxu0
        %1384 = vmatprep.mubr.f32.mxu0 0.0
        %1385 = vmatmul.mubr.f32.gmra.mxu0 %v1085
        %v1386 = vpop.f32.mrf.mxu0
        %v1387 = vadd.f32 %v1015, %v1386
        %v1388 = vpop.f32.mrf.mxu0
        %1389 = vmatprep.mubr.f32.mxu0 0.0
        %1390 = vmatmul.mubr.f32.gmra.mxu0 %v1088
        %v1391 = vpop.f32.mrf.mxu0
        %v1392 = vadd.f32 %v1015, %v1391
        %v1393 = vpop.f32.mrf.mxu0
        %1394 = vmatprep.mubr.f32.mxu0 0.0
        %1395 = vmatmul.mubr.f32.gmra.mxu0 %v1091
        %v1396 = vpop.f32.mrf.mxu0
        %v1397 = vadd.f32 %v1015, %v1396
        %v1398 = vpop.f32.mrf.mxu0
        %1399 = vmatprep.mubr.f32.mxu0 0.0
        %1400 = vmatmul.mubr.f32.gmra.mxu0 %v1094
        %v1401 = vpop.f32.mrf.mxu0
        %v1402 = vadd.f32 %v1015, %v1401
        %v1403 = vpop.f32.mrf.mxu0
        %1404 = vmatprep.mubr.f32.mxu0 0.0
        %1405 = vmatmul.mubr.f32.gmra.mxu0 %v1097
        %v1406 = vpop.f32.mrf.mxu0
        %v1407 = vadd.f32 %v1015, %v1406
        %v1408 = vpop.f32.mrf.mxu0
        %1409 = vmatprep.mubr.f32.mxu0 0.0
        %1410 = vmatmul.mubr.f32.gmra.mxu0 %v1100
        %v1411 = vpop.f32.mrf.mxu0
        %v1412 = vadd.f32 %v1015, %v1411
        %v1413 = vpop.f32.mrf.mxu0
        %1414 = vmatprep.mubr.f32.mxu0 0.0
        %1415 = vmatmul.mubr.f32.gmra.mxu0 %v1103
        %v1416 = vpop.f32.mrf.mxu0
        %v1417 = vadd.f32 %v1015, %v1416
        %v1418 = vpop.f32.mrf.mxu0
        %1419 = vmatprep.mubr.f32.mxu0 0.0
        %1420 = vmatmul.mubr.f32.gmra.mxu0 %v1106
        %v1421 = vpop.f32.mrf.mxu0
        %v1422 = vadd.f32 %v1015, %v1421
        %v1423 = vpop.f32.mrf.mxu0
        %1424 = vmatprep.mubr.f32.mxu0 0.0
        %1425 = vmatmul.mubr.f32.gmra.mxu0 %v1109
        %v1426 = vpop.f32.mrf.mxu0
        %v1427 = vadd.f32 %v1015, %v1426
        %v1428 = vpop.f32.mrf.mxu0
        %1429 = vmatprep.mubr.f32.mxu0 0.0
        %1430 = vmatmul.mubr.f32.gmra.mxu0 %v1112
        %v1431 = vpop.f32.mrf.mxu0
        %v1432 = vadd.f32 %v1015, %v1431
        %v1433 = vpop.f32.mrf.mxu0
        %1434 = vmatprep.mubr.f32.mxu0 0.0
        %1435 = vmatmul.mubr.f32.gmra.mxu0 %v1115
        %v1436 = vpop.f32.mrf.mxu0
        %v1437 = vadd.f32 %v1015, %v1436
        %v1438 = vpop.f32.mrf.mxu0
        %1439 = vmatprep.mubr.f32.mxu0 0.0
        %1440 = vmatmul.mubr.f32.gmra.mxu0 %v1118
        %v1441 = vpop.f32.mrf.mxu0
        %v1442 = vadd.f32 %v1015, %v1441
        %v1443 = vpop.f32.mrf.mxu0
        %1444 = vmatprep.mubr.f32.mxu0 0.0
        %1445 = vmatmul.mubr.f32.gmra.mxu0 %v1121
        %v1446 = vpop.f32.mrf.mxu0
        %v1447 = vadd.f32 %v1015, %v1446
        %v1448 = vpop.f32.mrf.mxu0
        %1449 = vmatprep.mubr.f32.mxu0 0.0
        %1450 = vmatmul.mubr.f32.gmra.mxu0 %v1124
        %v1451 = vpop.f32.mrf.mxu0
        %v1452 = vadd.f32 %v1015, %v1451
        %v1453 = vpop.f32.mrf.mxu0
        %1454 = vmatprep.mubr.f32.mxu0 0.0
        %1455 = vmatmul.mubr.f32.gmra.mxu0 %v1127
        %v1456 = vpop.f32.mrf.mxu0
        %v1457 = vadd.f32 %v1015, %v1456
        %v1458 = vpop.f32.mrf.mxu0
        %1459 = vmatprep.mubr.f32.mxu0 0.0
        %1460 = vmatmul.mubr.f32.gmra.mxu0 %v1130
        %v1461 = vpop.f32.mrf.mxu0
        %v1462 = vadd.f32 %v1015, %v1461
        %v1463 = vpop.f32.mrf.mxu0
        %1464 = vmatprep.mubr.f32.mxu0 0.0
        %1465 = vmatmul.mubr.f32.gmra.mxu0 %v1133
        %v1466 = vpop.f32.mrf.mxu0
        %v1467 = vadd.f32 %v1015, %v1466
        %v1468 = vpop.f32.mrf.mxu0
        %1469 = vmatprep.mubr.f32.mxu0 0.0
        %1470 = vmatmul.mubr.f32.gmra.mxu0 %v1136
        %v1471 = vpop.f32.mrf.mxu0
        %v1472 = vadd.f32 %v1015, %v1471
        %v1473 = vpop.f32.mrf.mxu0
        %1474 = vmatprep.mubr.f32.mxu0 0.0
        %1475 = vmatmul.mubr.f32.gmra.mxu0 %v1139
        %v1476 = vpop.f32.mrf.mxu0
        %v1477 = vadd.f32 %v1015, %v1476
        %v1478 = vpop.f32.mrf.mxu0
        %1479 = vmatprep.mubr.f32.mxu0 0.0
        %1480 = vmatmul.mubr.f32.gmra.mxu0 %v1142
        %v1481 = vpop.f32.mrf.mxu0
        %v1482 = vadd.f32 %v1015, %v1481
        %v1483 = vpop.f32.mrf.mxu0
        %1484 = vmatprep.mubr.f32.mxu0 0.0
        %1485 = vmatmul.mubr.f32.gmra.mxu0 %v1145
        %v1486 = vpop.f32.mrf.mxu0
        %v1487 = vadd.f32 %v1015, %v1486
        %v1488 = vpop.f32.mrf.mxu0
        %1489 = vmatprep.mubr.f32.mxu0 0.0
        %1490 = vmatmul.mubr.f32.gmra.mxu0 %v1148
        %v1491 = vpop.f32.mrf.mxu0
        %v1492 = vadd.f32 %v1015, %v1491
        %v1493 = vpop.f32.mrf.mxu0
        %1494 = vmatprep.mubr.f32.mxu0 0.0
        %1495 = vmatmul.mubr.f32.gmra.mxu0 %v1151
        %v1496 = vpop.f32.mrf.mxu0
        %v1497 = vadd.f32 %v1015, %v1496
        %v1498 = vpop.f32.mrf.mxu0
        %1499 = vmatprep.mubr.f32.mxu0 0.0
        %1500 = vmatmul.mubr.f32.gmra.mxu0 %v1154
        %v1501 = vpop.f32.mrf.mxu0
        %v1502 = vadd.f32 %v1015, %v1501
        %v1503 = vpop.f32.mrf.mxu0
        %1504 = vmatprep.mubr.f32.mxu0 0.0
        %1505 = vmatmul.mubr.f32.gmra.mxu0 %v1157
        %v1506 = vpop.f32.mrf.mxu0
        %v1507 = vadd.f32 %v1015, %v1506
        %v1508 = vpop.f32.mrf.mxu0
        %1509 = vmatprep.mubr.f32.mxu0 0.0
        %1510 = vmatmul.mubr.f32.gmra.mxu0 %v1160
        %v1511 = vpop.f32.mrf.mxu0
        %v1512 = vadd.f32 %v1015, %v1511
        %v1513 = vpop.f32.mrf.mxu0
        %1514 = vmatprep.mubr.f32.mxu0 0.0
        %1515 = vmatmul.mubr.f32.gmra.mxu0 %v1163
        %v1516 = vpop.f32.mrf.mxu0
        %v1517 = vadd.f32 %v1015, %v1516
        %v1518 = vpop.f32.mrf.mxu0
        %1519 = vmatprep.mubr.f32.mxu0 0.0
        %1520 = vmatmul.mubr.f32.gmra.mxu0 %v1166
        %v1521 = vpop.f32.mrf.mxu0
        %v1522 = vadd.f32 %v1015, %v1521
        %v1523 = vpop.f32.mrf.mxu0
        %1524 = vmatprep.mubr.f32.mxu0 0.0
        %1525 = vmatmul.mubr.f32.gmra.mxu0 %v1169
        %v1526 = vpop.f32.mrf.mxu0
        %v1527 = vadd.f32 %v1015, %v1526
        %v1528 = vpop.f32.mrf.mxu0
        %1529 = vmatprep.mubr.f32.mxu0 0.0
        %1530 = vmatmul.mubr.f32.gmra.mxu0 %v1172
        %v1531 = vpop.f32.mrf.mxu0
        %v1532 = vadd.f32 %v1015, %v1531
        %v1533 = vpop.f32.mrf.mxu0
        %1534 = vmatprep.mubr.f32.mxu0 0.0
        %1535 = vmatmul.mubr.f32.gmra.mxu0 %v1175
        %v1536 = vpop.f32.mrf.mxu0
        %v1537 = vadd.f32 %v1015, %v1536
        %v1538 = vpop.f32.mrf.mxu0
        %1539 = vmatprep.mubr.f32.mxu0 0.0
        %1540 = vmatmul.mubr.f32.gmra.mxu0 %v1178
        %v1541 = vpop.f32.mrf.mxu0
        %v1542 = vadd.f32 %v1015, %v1541
        %v1543 = vpop.f32.mrf.mxu0
        %1544 = vmatprep.mubr.f32.mxu0 0.0
        %1545 = vmatmul.mubr.f32.gmra.mxu0 %v1181
        %v1546 = vpop.f32.mrf.mxu0
        %v1547 = vadd.f32 %v1015, %v1546
        %v1548 = vpop.f32.mrf.mxu0
        %1549 = vmatprep.mubr.f32.mxu0 0.0
        %1550 = vmatmul.mubr.f32.gmra.mxu0 %v1184
        %v1551 = vpop.f32.mrf.mxu0
        %v1552 = vadd.f32 %v1015, %v1551
        %v1553 = vpop.f32.mrf.mxu0
        %1554 = vmatprep.mubr.f32.mxu0 0.0
        %1555 = vmatmul.mubr.f32.gmra.mxu0 %v1187
        %v1556 = vpop.f32.mrf.mxu0
        %v1557 = vadd.f32 %v1015, %v1556
        %v1558 = vpop.f32.mrf.mxu0
        %1559 = vmatprep.mubr.f32.mxu0 0.0
        %1560 = vmatmul.mubr.f32.gmra.mxu0 %v1190
        %v1561 = vpop.f32.mrf.mxu0
        %v1562 = vadd.f32 %v1015, %v1561
        %v1563 = vpop.f32.mrf.mxu0
        %1564 = vmatprep.mubr.f32.mxu0 0.0
        %1565 = vmatmul.mubr.f32.gmra.mxu0 %v1193
        %v1566 = vpop.f32.mrf.mxu0
        %v1567 = vadd.f32 %v1015, %v1566
        %v1568 = vpop.f32.mrf.mxu0
        %1569 = vmatprep.mubr.f32.mxu0 0.0
        %1570 = vmatmul.mubr.f32.gmra.mxu0 %v1196
        %v1571 = vpop.f32.mrf.mxu0
        %v1572 = vadd.f32 %v1015, %v1571
        %v1573 = vpop.f32.mrf.mxu0
        %1574 = vmatprep.mubr.f32.mxu0 0.0
        %1575 = vmatmul.mubr.f32.gmra.mxu0 %v1199
        %v1576 = vpop.f32.mrf.mxu0
        %v1577 = vadd.f32 %v1015, %v1576
        %v1578 = vpop.f32.mrf.mxu0
        %1579 = vmatprep.mubr.f32.mxu0 0.0
        %1580 = vmatmul.mubr.f32.gmra.mxu0 %v1202
        %v1581 = vpop.f32.mrf.mxu0
        %v1582 = vadd.f32 %v1015, %v1581
        %v1583 = vpop.f32.mrf.mxu0
        %1584 = vmatprep.mubr.f32.mxu0 0.0
        %1585 = vmatmul.mubr.f32.gmra.mxu0 %v1205
        %v1586 = vpop.f32.mrf.mxu0
        %v1587 = vadd.f32 %v1015, %v1586
        %v1588 = vpop.f32.mrf.mxu0
        %1589 = vmatprep.mubr.f32.mxu0 0.0
        %1590 = vmatmul.mubr.f32.gmra.mxu0 %v1208
        %v1591 = vpop.f32.mrf.mxu0
        %v1592 = vadd.f32 %v1015, %v1591
        %v1593 = vpop.f32.mrf.mxu0
        %1594 = vdwg.mxu0
        %v1595 = vmax.f32 %v1277, 0.0
        %v1596 = vmax.f32 %v1282, 0.0
        %v1597 = vmax.f32 %v1287, 0.0
        %v1598 = vmax.f32 %v1292, 0.0
        %v1599 = vmax.f32 %v1297, 0.0
        %v1600 = vmax.f32 %v1302, 0.0
        %v1601 = vmax.f32 %v1307, 0.0
        %v1602 = vmax.f32 %v1312, 0.0
        %v1603 = vmax.f32 %v1317, 0.0
        %v1604 = vmax.f32 %v1322, 0.0
        %v1605 = vmax.f32 %v1327, 0.0
        %v1606 = vmax.f32 %v1332, 0.0
        %v1607 = vmax.f32 %v1337, 0.0
        %v1608 = vmax.f32 %v1342, 0.0
        %v1609 = vmax.f32 %v1347, 0.0
        %v1610 = vmax.f32 %v1352, 0.0
        %v1611 = vmax.f32 %v1357, 0.0
        %v1612 = vmax.f32 %v1362, 0.0
        %v1613 = vmax.f32 %v1367, 0.0
        %v1614 = vmax.f32 %v1372, 0.0
        %v1615 = vmax.f32 %v1377, 0.0
        %v1616 = vmax.f32 %v1382, 0.0
        %v1617 = vmax.f32 %v1387, 0.0
        %v1618 = vmax.f32 %v1392, 0.0
        %v1619 = vmax.f32 %v1397, 0.0
        %v1620 = vmax.f32 %v1402, 0.0
        %v1621 = vmax.f32 %v1407, 0.0
        %v1622 = vmax.f32 %v1412, 0.0
        %v1623 = vmax.f32 %v1417, 0.0
        %v1624 = vmax.f32 %v1422, 0.0
        %v1625 = vmax.f32 %v1427, 0.0
        %v1626 = vmax.f32 %v1432, 0.0
        %v1627 = vmax.f32 %v1437, 0.0
        %v1628 = vmax.f32 %v1442, 0.0
        %v1629 = vmax.f32 %v1447, 0.0
        %v1630 = vmax.f32 %v1452, 0.0
        %v1631 = vmax.f32 %v1457, 0.0
        %v1632 = vmax.f32 %v1462, 0.0
        %v1633 = vmax.f32 %v1467, 0.0
        %v1634 = vmax.f32 %v1472, 0.0
        %v1635 = vmax.f32 %v1477, 0.0
        %v1636 = vmax.f32 %v1482, 0.0
        %v1637 = vmax.f32 %v1487, 0.0
        %v1638 = vmax.f32 %v1492, 0.0
        %v1639 = vmax.f32 %v1497, 0.0
        %v1640 = vmax.f32 %v1502, 0.0
        %v1641 = vmax.f32 %v1507, 0.0
        %v1642 = vmax.f32 %v1512, 0.0
        %v1643 = vmax.f32 %v1517, 0.0
        %v1644 = vmax.f32 %v1522, 0.0
        %v1645 = vmax.f32 %v1527, 0.0
        %v1646 = vmax.f32 %v1532, 0.0
        %v1647 = vmax.f32 %v1537, 0.0
        %v1648 = vmax.f32 %v1542, 0.0
        %v1649 = vmax.f32 %v1547, 0.0
        %v1650 = vmax.f32 %v1552, 0.0
        %v1651 = vmax.f32 %v1557, 0.0
        %v1652 = vmax.f32 %v1562, 0.0
        %v1653 = vmax.f32 %v1567, 0.0
        %v1654 = vmax.f32 %v1572, 0.0
        %v1655 = vmax.f32 %v1577, 0.0
        %v1656 = vmax.f32 %v1582, 0.0
        %v1657 = vmax.f32 %v1587, 0.0
        %v1658 = vmax.f32 %v1592, 0.0
        %v1659 = vld [vmem:[%s5] sm:$0x1]
        %v1660 = vld [vmem:[#allocation2] sm:$0x1]
        %1662 = vset.pattern.permute.xlu0 0
        %1663 = vperm.xlu0 %1662, %v1660
        %v1664 = vpop.permute.xlu0 %1663
        %v1666 = vlaneseq
        %v1667 = vshrl.u32 %v1666, 7
        %v1668 = vsub.s32 0, %v1667
        %v1669 = vrot.slane %v1664, %v1668
        %vm1670 = vcmask 261120
        %v1672 = vsel %vm1670, %v1659, 0
        %v1675 = vsel %vm1670, %v1595, 0
        %v1678 = vsel %vm1670, %v1596, 0
        %v1681 = vsel %vm1670, %v1597, 0
        %v1684 = vsel %vm1670, %v1598, 0
        %v1687 = vsel %vm1670, %v1599, 0
        %v1690 = vsel %vm1670, %v1600, 0
        %v1693 = vsel %vm1670, %v1601, 0
        %v1696 = vsel %vm1670, %v1602, 0
        %v1699 = vsel %vm1670, %v1603, 0
        %v1702 = vsel %vm1670, %v1604, 0
        %v1705 = vsel %vm1670, %v1605, 0
        %v1708 = vsel %vm1670, %v1606, 0
        %v1711 = vsel %vm1670, %v1607, 0
        %v1714 = vsel %vm1670, %v1608, 0
        %v1717 = vsel %vm1670, %v1609, 0
        %v1720 = vsel %vm1670, %v1610, 0
        %v1723 = vsel %vm1670, %v1611, 0
        %v1726 = vsel %vm1670, %v1612, 0
        %v1729 = vsel %vm1670, %v1613, 0
        %v1732 = vsel %vm1670, %v1614, 0
        %v1735 = vsel %vm1670, %v1615, 0
        %v1738 = vsel %vm1670, %v1616, 0
        %v1741 = vsel %vm1670, %v1617, 0
        %v1744 = vsel %vm1670, %v1618, 0
        %v1747 = vsel %vm1670, %v1619, 0
        %v1750 = vsel %vm1670, %v1620, 0
        %v1753 = vsel %vm1670, %v1621, 0
        %v1756 = vsel %vm1670, %v1622, 0
        %v1759 = vsel %vm1670, %v1623, 0
        %v1762 = vsel %vm1670, %v1624, 0
        %v1765 = vsel %vm1670, %v1625, 0
        %v1768 = vsel %vm1670, %v1626, 0
        %v1771 = vsel %vm1670, %v1627, 0
        %v1774 = vsel %vm1670, %v1628, 0
        %v1777 = vsel %vm1670, %v1629, 0
        %v1780 = vsel %vm1670, %v1630, 0
        %v1783 = vsel %vm1670, %v1631, 0
        %v1786 = vsel %vm1670, %v1632, 0
        %v1789 = vsel %vm1670, %v1633, 0
        %v1792 = vsel %vm1670, %v1634, 0
        %v1795 = vsel %vm1670, %v1635, 0
        %v1798 = vsel %vm1670, %v1636, 0
        %v1801 = vsel %vm1670, %v1637, 0
        %v1804 = vsel %vm1670, %v1638, 0
        %v1807 = vsel %vm1670, %v1639, 0
        %v1810 = vsel %vm1670, %v1640, 0
        %v1813 = vsel %vm1670, %v1641, 0
        %v1816 = vsel %vm1670, %v1642, 0
        %v1819 = vsel %vm1670, %v1643, 0
        %v1822 = vsel %vm1670, %v1644, 0
        %v1825 = vsel %vm1670, %v1645, 0
        %v1828 = vsel %vm1670, %v1646, 0
        %v1831 = vsel %vm1670, %v1647, 0
        %v1834 = vsel %vm1670, %v1648, 0
        %v1837 = vsel %vm1670, %v1649, 0
        %v1840 = vsel %vm1670, %v1650, 0
        %v1843 = vsel %vm1670, %v1651, 0
        %v1846 = vsel %vm1670, %v1652, 0
        %v1849 = vsel %vm1670, %v1653, 0
        %v1852 = vsel %vm1670, %v1654, 0
        %v1855 = vsel %vm1670, %v1655, 0
        %v1858 = vsel %vm1670, %v1656, 0
        %v1861 = vsel %vm1670, %v1657, 0
        %v1864 = vsel %vm1670, %v1658, 0
        %1866 = vmatprep.subr.mxu0 0.0
        %1867 = vmatpush1.xpose.msra.mxu0 %v1720
        %1868 = vmatprep.subr.mxu0 0.0
        %1869 = vmatpush1.xpose.msra.mxu0 %v1717
        %1870 = vmatprep.subr.mxu0 0.0
        %1871 = vmatpush1.xpose.msra.mxu0 %v1714
        %1872 = vmatprep.subr.mxu0 0.0
        %1873 = vmatpush1.xpose.msra.mxu0 %v1711
        %1874 = vmatprep.subr.mxu0 0.0
        %1875 = vmatpush1.xpose.msra.mxu0 %v1708
        %1876 = vmatprep.subr.mxu0 0.0
        %1877 = vmatpush1.xpose.msra.mxu0 %v1705
        %1878 = vmatprep.subr.mxu0 0.0
        %1879 = vmatpush1.xpose.msra.mxu0 %v1702
        %1880 = vmatprep.subr.mxu0 0.0
        %1881 = vmatpush1.xpose.msra.mxu0 %v1699
        %1882 = vmatprep.subr.mxu0 0.0
        %1883 = vmatpush1.xpose.msra.mxu0 %v1696
        %1884 = vmatprep.subr.mxu0 0.0
        %1885 = vmatpush1.xpose.msra.mxu0 %v1693
        %1886 = vmatprep.subr.mxu0 0.0
        %1887 = vmatpush1.xpose.msra.mxu0 %v1690
        %1888 = vmatprep.subr.mxu0 0.0
        %1889 = vmatpush1.xpose.msra.mxu0 %v1687
        %1890 = vmatprep.subr.mxu0 0.0
        %1891 = vmatpush1.xpose.msra.mxu0 %v1684
        %1892 = vmatprep.subr.mxu0 0.0
        %1893 = vmatpush1.xpose.msra.mxu0 %v1681
        %1894 = vmatprep.subr.mxu0 0.0
        %1895 = vmatpush1.xpose.msra.mxu0 %v1678
        %1896 = vmatprep.subr.mxu0 0.0
        %1897 = vmatpush1.xpose.msra.mxu0 %v1675
        %1898 = vmatprep.subr.mxu0 0.0
        %1899 = vmatpush2.xpose.msra.mxu0 %v1768
        %1900 = vmatprep.subr.mxu0 0.0
        %1901 = vmatpush2.xpose.msra.mxu0 %v1765
        %1902 = vmatprep.subr.mxu0 0.0
        %1903 = vmatpush2.xpose.msra.mxu0 %v1762
        %1904 = vmatprep.subr.mxu0 0.0
        %1905 = vmatpush2.xpose.msra.mxu0 %v1759
        %1906 = vmatprep.subr.mxu0 0.0
        %1907 = vmatpush2.xpose.msra.mxu0 %v1756
        %1908 = vmatprep.subr.mxu0 0.0
        %1909 = vmatpush2.xpose.msra.mxu0 %v1753
        %1910 = vmatprep.subr.mxu0 0.0
        %1911 = vmatpush2.xpose.msra.mxu0 %v1750
        %1912 = vmatprep.subr.mxu0 0.0
        %1913 = vmatpush2.xpose.msra.mxu0 %v1747
        %1914 = vmatprep.subr.mxu0 0.0
        %1915 = vmatpush2.xpose.msra.mxu0 %v1744
        %1916 = vmatprep.subr.mxu0 0.0
        %1917 = vmatpush2.xpose.msra.mxu0 %v1741
        %1918 = vmatprep.subr.mxu0 0.0
        %1919 = vmatpush2.xpose.msra.mxu0 %v1738
        %1920 = vmatprep.subr.mxu0 0.0
        %1921 = vmatpush2.xpose.msra.mxu0 %v1735
        %1922 = vmatprep.subr.mxu0 0.0
        %1923 = vmatpush2.xpose.msra.mxu0 %v1732
        %1924 = vmatprep.subr.mxu0 0.0
        %1925 = vmatpush2.xpose.msra.mxu0 %v1729
        %1926 = vmatprep.subr.mxu0 0.0
        %1927 = vmatpush2.xpose.msra.mxu0 %v1726
        %1928 = vmatprep.subr.mxu0 0.0
        %1929 = vmatpush2.xpose.msra.mxu0 %v1723
        %1930 = vmatprep.mubr.f32.mxu0 0.0
        %1931 = vmatmul.mubr.f32.gmra.mxu0 %v1672
        %v1932 = vpop.f32.mrf.mxu0
        %v1933 = vadd.f32 %v1669, %v1932
        %v1934 = vpop.f32.mrf.mxu0
        %v1935 = vadd.f32 %v1669, %v1934
        %1936 = vdwg.mxu0
        %1937 = vmatprep.subr.mxu0 0.0
        %1938 = vmatpush1.xpose.msra.mxu0 %v1816
        %1939 = vmatprep.subr.mxu0 0.0
        %1940 = vmatpush1.xpose.msra.mxu0 %v1813
        %1941 = vmatprep.subr.mxu0 0.0
        %1942 = vmatpush1.xpose.msra.mxu0 %v1810
        %1943 = vmatprep.subr.mxu0 0.0
        %1944 = vmatpush1.xpose.msra.mxu0 %v1807
        %1945 = vmatprep.subr.mxu0 0.0
        %1946 = vmatpush1.xpose.msra.mxu0 %v1804
        %1947 = vmatprep.subr.mxu0 0.0
        %1948 = vmatpush1.xpose.msra.mxu0 %v1801
        %1949 = vmatprep.subr.mxu0 0.0
        %1950 = vmatpush1.xpose.msra.mxu0 %v1798
        %1951 = vmatprep.subr.mxu0 0.0
        %1952 = vmatpush1.xpose.msra.mxu0 %v1795
        %1953 = vmatprep.subr.mxu0 0.0
        %1954 = vmatpush1.xpose.msra.mxu0 %v1792
        %1955 = vmatprep.subr.mxu0 0.0
        %1956 = vmatpush1.xpose.msra.mxu0 %v1789
        %1957 = vmatprep.subr.mxu0 0.0
        %1958 = vmatpush1.xpose.msra.mxu0 %v1786
        %1959 = vmatprep.subr.mxu0 0.0
        %1960 = vmatpush1.xpose.msra.mxu0 %v1783
        %1961 = vmatprep.subr.mxu0 0.0
        %1962 = vmatpush1.xpose.msra.mxu0 %v1780
        %1963 = vmatprep.subr.mxu0 0.0
        %1964 = vmatpush1.xpose.msra.mxu0 %v1777
        %1965 = vmatprep.subr.mxu0 0.0
        %1966 = vmatpush1.xpose.msra.mxu0 %v1774
        %1967 = vmatprep.subr.mxu0 0.0
        %1968 = vmatpush1.xpose.msra.mxu0 %v1771
        %1969 = vmatprep.subr.mxu0 0.0
        %1970 = vmatpush2.xpose.msra.mxu0 %v1864
        %1971 = vmatprep.subr.mxu0 0.0
        %1972 = vmatpush2.xpose.msra.mxu0 %v1861
        %1973 = vmatprep.subr.mxu0 0.0
        %1974 = vmatpush2.xpose.msra.mxu0 %v1858
        %1975 = vmatprep.subr.mxu0 0.0
        %1976 = vmatpush2.xpose.msra.mxu0 %v1855
        %1977 = vmatprep.subr.mxu0 0.0
        %1978 = vmatpush2.xpose.msra.mxu0 %v1852
        %1979 = vmatprep.subr.mxu0 0.0
        %1980 = vmatpush2.xpose.msra.mxu0 %v1849
        %1981 = vmatprep.subr.mxu0 0.0
        %1982 = vmatpush2.xpose.msra.mxu0 %v1846
        %1983 = vmatprep.subr.mxu0 0.0
        %1984 = vmatpush2.xpose.msra.mxu0 %v1843
        %1985 = vmatprep.subr.mxu0 0.0
        %1986 = vmatpush2.xpose.msra.mxu0 %v1840
        %1987 = vmatprep.subr.mxu0 0.0
        %1988 = vmatpush2.xpose.msra.mxu0 %v1837
        %1989 = vmatprep.subr.mxu0 0.0
        %1990 = vmatpush2.xpose.msra.mxu0 %v1834
        %1991 = vmatprep.subr.mxu0 0.0
        %1992 = vmatpush2.xpose.msra.mxu0 %v1831
        %1993 = vmatprep.subr.mxu0 0.0
        %1994 = vmatpush2.xpose.msra.mxu0 %v1828
        %1995 = vmatprep.subr.mxu0 0.0
        %1996 = vmatpush2.xpose.msra.mxu0 %v1825
        %1997 = vmatprep.subr.mxu0 0.0
        %1998 = vmatpush2.xpose.msra.mxu0 %v1822
        %1999 = vmatprep.subr.mxu0 0.0
        %2000 = vmatpush2.xpose.msra.mxu0 %v1819
        %2001 = vmatprep.mubr.f32.mxu0 0.0
        %2002 = vmatmul.mubr.f32.gmra.mxu0 %v1672
        %v2003 = vpop.f32.mrf.mxu0
        %v2004 = vadd.f32 %v1669, %v2003
        %v2005 = vpop.f32.mrf.mxu0
        %v2006 = vadd.f32 %v1669, %v2005
        %2007 = vdwg.mxu0
        %2009 = vst [vmem:[%s274] ss:$4 sm:$0x1] %v1933
        %s2011 = scalar_lea.vmem %s274, 1 [#allocation3]
        %2012 = vst [vmem:[%s2011] ss:$4 sm:$0x1] %v1935
        %s2014 = scalar_lea.vmem %s274, 2 [#allocation3]
        %2015 = vst [vmem:[%s2014] ss:$4 sm:$0x1] %v2004
        %s2017 = scalar_lea.vmem %s274, 3 [#allocation3]
        %2018 = vst [vmem:[%s2017] ss:$4 sm:$0x1] %v2006
        %s2019 = sand.u32 %s183, 1
        %s2020 = scalar_lea.sflag [#allocation4], %s2019
        %s2021 = sand.u32 %s183, 1
        %s2022 = smul.addr %s2021, 4
        %s2023 = scalar_lea.vmem [#allocation3], %s2022
        // Predicated region
        $region49: #{_forward_flat.1} parent=47 // pred_check
          %p2024 = pneg %p193
        $region50: #{_forward_flat.1} parent=47 // pred_check_branch
          %2026 = sbr.rel (%p2024) target = $region52
        $region51: #{_forward_flat.1} parent=47 // pred_region
          %s2028 = ssub.s32 64, 64
          %2029 = vsyncadd %s2020, %s2028
          %s2030 = smul.addr %s23, 64
          %s2031 = scalar_lea.hbm %s7, %s2030
          %s2033 = sshll.u32 %s2023, 4
          %s2034 = int_to_ptr.vmem [resolvable:$true] %s2033
          %2036 = dma.vmem_to_hbm [thread:$0]  %s2034, 64, %s2031, %s2020
        $region52: #{_forward_flat.1} parent=47 // pred_fallthru
          _
      $region48: #{_forward_flat.1} parent=5 // pred_fallthru
        _
      %p2037 = scmp.le.s32.totalorder 2, %s18
      // Predicated region
      $region53: #{_forward_flat.1} parent=5 // pred_check
        %p2038 = pneg %p2037
      $region54: #{_forward_flat.1} parent=5 // pred_check_branch
        %2040 = sbr.rel (%p2038) target = $region56
      $region55: #{_forward_flat.1} parent=5 // pred_region
        %s2041 = ssub.s32 %s18, 2
        // Predicated region
        $region57: #{_forward_flat.1} parent=55 // pred_check
          %p2042 = pneg %p199
        $region58: #{_forward_flat.1} parent=55 // pred_check_branch
          %2044 = sbr.rel (%p2042) target = $region60
        $region59: #{_forward_flat.1} parent=55 // pred_region
          %s2045 = sand.u32 %s184, 1
          %s2046 = scalar_lea.sflag [#allocation4], %s2045
          %s2047 = sand.u32 %s184, 1
          %s2048 = smul.addr %s2047, 4
          %s2049 = scalar_lea.vmem [#allocation3], %s2048
          %2050 = dma.done %s2046, 64
        $region60: #{_forward_flat.1} parent=55 // pred_fallthru
          _
      $region56: #{_forward_flat.1} parent=5 // pred_fallthru
        _
    $region6: #{_forward_flat.1} parent=1 // loop_footer
      %s22 = sadd.s32 1, %s18
    $region7: #{_forward_flat.1} parent=1 // loop_footer_branch
      %17 = sbr.rel target = $region3
    $region8: #{_forward_flat.1} parent=1 // loop_exit
      _
    %2051 = vsyncpa [#allocation4], 1
    %s2052 = scalar_lea.sflag [#allocation4], 1
    %2053 = vsyncpa %s2052, 1

</llo_original>
